<compile_context>
chip_gen: v6e
topology: v6e:2x2x1
jax: 0.10.0
libtpu: 0.0.40
codegen_flags: <defaults>
</compile_context>

<pallas_src>
import jax
import jax.numpy as jnp
from jax import lax
from jax.experimental import pallas as pl
from jax.experimental.pallas import tpu as pltpu

# ---------------- model hyper-params (small, consistent with the module) ----
B = 2            # batch (n_samples)
T = 8            # tokens (n_patches + 1)
D = 32           # dim
N_HEADS = 4
HEAD_DIM = D // N_HEADS
MLP_RATIO = 4.0
HIDDEN = int(D * MLP_RATIO)
LN_EPS = 1e-6


def _layernorm(x, gamma, beta):
    # gamma/beta are (1, D) rows -> plain sublane broadcast against (N, D).
    mu = jnp.mean(x, axis=-1, keepdims=True)
    var = jnp.mean((x - mu) ** 2, axis=-1, keepdims=True)
    return (x - mu) * lax.rsqrt(var + LN_EPS) * gamma + beta


def transformer_block_kernel(
    x_ref,
    ln1_g_ref, ln1_b_ref,
    wqkv_ref, bqkv_ref,
    wproj_ref, bproj_ref,
    ln2_g_ref, ln2_b_ref,
    w1_ref, b1_ref,
    w2_ref, b2_ref,
    o_ref,
):
    f32, bf16 = jnp.float32, jnp.bfloat16
    x = x_ref[...].astype(f32)                                   # (B*T, D)

    # ---- x = x + Attention(LayerNorm(x)) ------------------------------------
    xn = _layernorm(x, ln1_g_ref[...], ln1_b_ref[...])           # (B*T, D)
    # Softmax scale is pre-folded into the Q columns of wqkv / bqkv (host side).
    qkv = jnp.dot(xn.astype(bf16), wqkv_ref[...],
                  preferred_element_type=f32) + bqkv_ref[...]    # (B*T, 3D) f32

    def split_heads(col0):
        # columns [col0, col0+D) of qkv -> (B*H, T, hd), batch index = b*H + h.
        return jnp.stack(
            [qkv[b * T:(b + 1) * T,
                 col0 + h * HEAD_DIM: col0 + (h + 1) * HEAD_DIM]
             for b in range(B) for h in range(N_HEADS)], axis=0)

    q = split_heads(0)               # (B*H, T, hd), already scaled by hd**-0.5
    k = split_heads(D)
    v = split_heads(2 * D)

    # One batched contraction + one softmax for all B*H head/sample pairs.
    s = jnp.einsum('bqd,bkd->bqk', q.astype(bf16), k.astype(bf16),
                   preferred_element_type=f32)                   # (B*H, T, T)
    s = s - jnp.max(s, axis=-1, keepdims=True)
    e = jnp.exp(s)
    p = e * pl.reciprocal(jnp.sum(e, axis=-1, keepdims=True), approx=True)
    wa = jnp.einsum('bqk,bkd->bqd', p.astype(bf16), v.astype(bf16),
                    preferred_element_type=f32)                  # (B*H, T, hd)

    # transpose(1,2).flatten(2): head h -> output feature columns [h*hd,(h+1)*hd)
    weighted = jnp.concatenate(
        [jnp.concatenate([wa[b * N_HEADS + h] for h in range(N_HEADS)], axis=-1)
         for b in range(B)], axis=0)                             # (B*T, D)

    attn_out = jnp.dot(weighted.astype(bf16), wproj_ref[...],
                       preferred_element_type=f32) + bproj_ref[...]
    x = x + attn_out

    # ---- x = x + MLP(LayerNorm(x)) ------------------------------------------
    xn2 = _layernorm(x, ln2_g_ref[...], ln2_b_ref[...])
    h1 = jnp.dot(xn2.astype(bf16), w1_ref[...],
                 preferred_element_type=f32) + b1_ref[...]       # (B*T, HIDDEN)
    h1 = jax.nn.gelu(h1, approximate=True)   # tanh GELU -> EUP (vs erf on VALU)
    h2 = jnp.dot(h1.astype(bf16), w2_ref[...],
                 preferred_element_type=f32) + b2_ref[...]       # (B*T, D)
    x = x + h2

    o_ref[...] = x.astype(o_ref.dtype)


def transformer_block(x, params):
    (ln1_g, ln1_b, wqkv, bqkv, wproj, bproj,
     ln2_g, ln2_b, w1, b1, w2, b2) = params

    # Host-side (free) prep: fold the attention scale into the Q projection and
    # cast matmul weights to bf16 for the MXU; biases / LN params stay f32.
    scale = HEAD_DIM ** (-0.5)
    col_scale = jnp.concatenate(
        [jnp.full((1, D), scale, jnp.float32),
         jnp.ones((1, 2 * D), jnp.float32)], axis=1)             # (1, 3D)
    wqkv_s = (wqkv * col_scale).astype(jnp.bfloat16)
    bqkv_s = bqkv * col_scale
    wproj_b = wproj.astype(jnp.bfloat16)
    w1_b = w1.astype(jnp.bfloat16)
    w2_b = w2.astype(jnp.bfloat16)

    x2 = x.reshape(B * T, D)
    args = (x2, ln1_g, ln1_b, wqkv_s, bqkv_s, wproj_b, bproj,
            ln2_g, ln2_b, w1_b, b1, w2_b, b2)

    def full_spec(a):
        zeros = (0,) * a.ndim
        return pl.BlockSpec(a.shape, lambda i, z=zeros: z)

    out = pl.pallas_call(
        transformer_block_kernel,
        out_shape=jax.ShapeDtypeStruct((B * T, D), x.dtype),
        # Single grid step: whole batch at once — per-step pipeline overhead
        # dominates at this problem size.  For larger B (esp. v7x with 2 TCs),
        # add a leading "parallel" batch-chunk axis here instead.
        grid=(1,),
        in_specs=[full_spec(a) for a in args],
        out_specs=pl.BlockSpec((B * T, D), lambda i: (0, 0)),
        compiler_params=pltpu.CompilerParams(
            dimension_semantics=("arbitrary",)),
    )(*args)
    return out.reshape(B, T, D)


def init_params(key):
    ks = jax.random.split(key, 8)
    s = 0.02
    # LayerNorm: gamma=1, beta=0 (PyTorch default init), stored as (1, D)
    ln1_g = jnp.ones((1, D), jnp.float32)
    ln1_b = jnp.zeros((1, D), jnp.float32)
    ln2_g = jnp.ones((1, D), jnp.float32)
    ln2_b = jnp.zeros((1, D), jnp.float32)
    # Linear weights stored (in, out) == PyTorch weight.T
    wqkv = s * jax.random.normal(ks[0], (D, 3 * D), jnp.float32)
    bqkv = s * jax.random.normal(ks[1], (1, 3 * D), jnp.float32)
    wproj = s * jax.random.normal(ks[2], (D, D), jnp.float32)
    bproj = s * jax.random.normal(ks[3], (1, D), jnp.float32)
    w1 = s * jax.random.normal(ks[4], (D, HIDDEN), jnp.float32)
    b1 = s * jax.random.normal(ks[5], (1, HIDDEN), jnp.float32)
    w2 = s * jax.random.normal(ks[6], (HIDDEN, D), jnp.float32)
    b2 = s * jax.random.normal(ks[7], (1, D), jnp.float32)
    return (ln1_g, ln1_b, wqkv, bqkv, wproj, bproj,
            ln2_g, ln2_b, w1, b1, w2, b2)


def reference_block(x, params):
    """Pure-JAX f32 reference mirroring the PyTorch forward (dropout p=0)."""
    (ln1_g, ln1_b, wqkv, bqkv, wproj, bproj,
     ln2_g, ln2_b, w1, b1, w2, b2) = params

    def ln(v, g, b):
        mu = jnp.mean(v, -1, keepdims=True)
        var = jnp.mean((v - mu) ** 2, -1, keepdims=True)
        return (v - mu) / jnp.sqrt(var + LN_EPS) * g + b

    xn = ln(x, ln1_g[0], ln1_b[0])
    qkv = xn @ wqkv + bqkv[0]                                 # (B, T, 3D)
    qkv = qkv.reshape(B, T, 3, N_HEADS, HEAD_DIM).transpose(2, 0, 3, 1, 4)
    q, k, v = qkv[0], qkv[1], qkv[2]                          # (B, H, T, hd)
    dp = jnp.einsum('bhtd,bhsd->bhts', q, k) * HEAD_DIM ** -0.5
    attn = jax.nn.softmax(dp, axis=-1)
    wa = jnp.einsum('bhts,bhsd->bhtd', attn, v)               # (B, H, T, hd)
    wa = wa.transpose(0, 2, 1, 3).reshape(B, T, D)
    x = x + (wa @ wproj + bproj[0])
    xn2 = ln(x, ln2_g[0], ln2_b[0])
    h1 = jax.nn.gelu(xn2 @ w1 + b1[0], approximate=False)     # exact erf (PyTorch)
    x = x + (h1 @ w2 + b2[0])
    return x


if __name__ == "__main__":
    key = jax.random.PRNGKey(0)
    kx, kp = jax.random.split(key)
    x = jax.random.normal(kx, (B, T, D), jnp.float32)
    params = init_params(kp)

    out = transformer_block(x, params)
    out = jax.block_until_ready(out)

    ref = reference_block(x, params)
    assert out.shape == (B, T, D) and out.dtype == jnp.float32
    # Tolerance relaxed vs. the all-f32 version: bf16 MXU operands, tanh GELU
    # and the approx softmax reciprocal perturb the result by ~1e-3.
    assert jnp.allclose(out, ref, atol=1e-2, rtol=1e-2), "mismatch vs reference"
    print("KERNEL_OK")
</pallas_src>

<mosaic_0001>
module attributes {stable_mosaic.version = 11 : i64} {
  func.func @transformer_block_kernel(%arg0: i32, %arg1: memref<16x32xf32, #tpu.memory_space<vmem>>, %arg2: memref<1x32xf32, #tpu.memory_space<vmem>>, %arg3: memref<1x32xf32, #tpu.memory_space<vmem>>, %arg4: memref<32x96xbf16, #tpu.memory_space<vmem>>, %arg5: memref<1x96xf32, #tpu.memory_space<vmem>>, %arg6: memref<32x32xbf16, #tpu.memory_space<vmem>>, %arg7: memref<1x32xf32, #tpu.memory_space<vmem>>, %arg8: memref<1x32xf32, #tpu.memory_space<vmem>>, %arg9: memref<1x32xf32, #tpu.memory_space<vmem>>, %arg10: memref<32x128xbf16, #tpu.memory_space<vmem>>, %arg11: memref<1x128xf32, #tpu.memory_space<vmem>>, %arg12: memref<128x32xbf16, #tpu.memory_space<vmem>>, %arg13: memref<1x32xf32, #tpu.memory_space<vmem>>, %arg14: memref<16x32xf32, #tpu.memory_space<vmem>>) attributes {dimension_semantics = [#tpu.dimension_semantics<arbitrary>], iteration_bounds = array<i64: 1>, scalar_prefetch = 0 : i64, scratch_operands = 0 : i64, tpu.core_type = #tpu.core_type<tc>, window_params = [{pipeline_mode = #tpu.pipeline_mode<synchronous>, transform_indices = @transform_0, window_bounds = array<i64: 16, 32>}, {pipeline_mode = #tpu.pipeline_mode<synchronous>, transform_indices = @transform_1, window_bounds = array<i64: 1, 32>}, {pipeline_mode = #tpu.pipeline_mode<synchronous>, transform_indices = @transform_2, window_bounds = array<i64: 1, 32>}, {pipeline_mode = #tpu.pipeline_mode<synchronous>, transform_indices = @transform_3, window_bounds = array<i64: 32, 96>}, {pipeline_mode = #tpu.pipeline_mode<synchronous>, transform_indices = @transform_4, window_bounds = array<i64: 1, 96>}, {pipeline_mode = #tpu.pipeline_mode<synchronous>, transform_indices = @transform_5, window_bounds = array<i64: 32, 32>}, {pipeline_mode = #tpu.pipeline_mode<synchronous>, transform_indices = @transform_6, window_bounds = array<i64: 1, 32>}, {pipeline_mode = #tpu.pipeline_mode<synchronous>, transform_indices = @transform_7, window_bounds = array<i64: 1, 32>}, {pipeline_mode = #tpu.pipeline_mode<synchronous>, transform_indices = @transform_8, window_bounds = array<i64: 1, 32>}, {pipeline_mode = #tpu.pipeline_mode<synchronous>, transform_indices = @transform_9, window_bounds = array<i64: 32, 128>}, {pipeline_mode = #tpu.pipeline_mode<synchronous>, transform_indices = @transform_10, window_bounds = array<i64: 1, 128>}, {pipeline_mode = #tpu.pipeline_mode<synchronous>, transform_indices = @transform_11, window_bounds = array<i64: 128, 32>}, {pipeline_mode = #tpu.pipeline_mode<synchronous>, transform_indices = @transform_12, window_bounds = array<i64: 1, 32>}, {pipeline_mode = #tpu.pipeline_mode<synchronous>, transform_indices = @transform_13, window_bounds = array<i64: 16, 32>}]} {
    %c0 = arith.constant 0 : index
    %c0_0 = arith.constant 0 : index
    %0 = vector.load %arg1[%c0, %c0_0] : memref<16x32xf32, #tpu.memory_space<vmem>>, vector<16x32xf32>
    %c0_1 = arith.constant 0 : index
    %c0_2 = arith.constant 0 : index
    %1 = vector.load %arg2[%c0_1, %c0_2] : memref<1x32xf32, #tpu.memory_space<vmem>>, vector<1x32xf32>
    %c0_3 = arith.constant 0 : index
    %c0_4 = arith.constant 0 : index
    %2 = vector.load %arg3[%c0_3, %c0_4] : memref<1x32xf32, #tpu.memory_space<vmem>>, vector<1x32xf32>
    %cst = arith.constant dense<0.000000e+00> : vector<16xf32>
    %3 = vector.multi_reduction <add>, %0, %cst [1] : vector<16x32xf32> to vector<16xf32>
    %4 = vector.shape_cast %3 : vector<16xf32> to vector<16x1xf32>
    %cst_5 = arith.constant 3.200000e+01 : f32
    %5 = vector.broadcast %cst_5 : f32 to vector<16x1xf32>
    %6 = arith.divf %4, %5 : vector<16x1xf32>
    %7 = vector.broadcast %6 : vector<16x1xf32> to vector<16x32xf32>
    %8 = arith.subf %0, %7 : vector<16x32xf32>
    %9 = arith.mulf %8, %8 : vector<16x32xf32>
    %cst_6 = arith.constant dense<0.000000e+00> : vector<16xf32>
    %10 = vector.multi_reduction <add>, %9, %cst_6 [1] : vector<16x32xf32> to vector<16xf32>
    %11 = vector.shape_cast %10 : vector<16xf32> to vector<16x1xf32>
    %cst_7 = arith.constant 3.200000e+01 : f32
    %12 = vector.broadcast %cst_7 : f32 to vector<16x1xf32>
    %13 = arith.divf %11, %12 : vector<16x1xf32>
    %14 = vector.broadcast %6 : vector<16x1xf32> to vector<16x32xf32>
    %15 = arith.subf %0, %14 : vector<16x32xf32>
    %cst_8 = arith.constant 9.99999997E-7 : f32
    %16 = vector.broadcast %cst_8 : f32 to vector<16x1xf32>
    %17 = arith.addf %13, %16 : vector<16x1xf32>
    %18 = math.rsqrt %17 : vector<16x1xf32>
    %19 = vector.broadcast %18 : vector<16x1xf32> to vector<16x32xf32>
    %20 = arith.mulf %15, %19 : vector<16x32xf32>
    %21 = vector.broadcast %1 : vector<1x32xf32> to vector<16x32xf32>
    %22 = arith.mulf %20, %21 : vector<16x32xf32>
    %23 = vector.broadcast %2 : vector<1x32xf32> to vector<16x32xf32>
    %24 = arith.addf %22, %23 : vector<16x32xf32>
    %25 = arith.truncf %24 : vector<16x32xf32> to vector<16x32xbf16>
    %c0_9 = arith.constant 0 : index
    %c0_10 = arith.constant 0 : index
    %26 = vector.load %arg4[%c0_9, %c0_10] : memref<32x96xbf16, #tpu.memory_space<vmem>>, vector<32x96xbf16>
    %cst_11 = arith.constant dense<0.000000e+00> : vector<16x96xf32>
    %27 = tpu.matmul %25, %26, %cst_11 {dimension_numbers = #tpu.dot_dimension_numbers<[1], [0], [0], [1], [0, 0, 1, 1], [], []>} : vector<16x32xbf16>, vector<32x96xbf16>, vector<16x96xf32> -> vector<16x96xf32>
    %c0_12 = arith.constant 0 : index
    %c0_13 = arith.constant 0 : index
    %28 = vector.load %arg5[%c0_12, %c0_13] : memref<1x96xf32, #tpu.memory_space<vmem>>, vector<1x96xf32>
    %29 = vector.broadcast %28 : vector<1x96xf32> to vector<16x96xf32>
    %30 = arith.addf %27, %29 : vector<16x96xf32>
    %31 = vector.extract_strided_slice %30 {offsets = [0, 0], sizes = [8, 8], strides = [1, 1]} : vector<16x96xf32> to vector<8x8xf32>
    %32 = vector.extract_strided_slice %30 {offsets = [0, 8], sizes = [8, 8], strides = [1, 1]} : vector<16x96xf32> to vector<8x8xf32>
    %33 = vector.extract_strided_slice %30 {offsets = [0, 16], sizes = [8, 8], strides = [1, 1]} : vector<16x96xf32> to vector<8x8xf32>
    %34 = vector.extract_strided_slice %30 {offsets = [0, 24], sizes = [8, 8], strides = [1, 1]} : vector<16x96xf32> to vector<8x8xf32>
    %35 = vector.extract_strided_slice %30 {offsets = [8, 0], sizes = [8, 8], strides = [1, 1]} : vector<16x96xf32> to vector<8x8xf32>
    %36 = vector.extract_strided_slice %30 {offsets = [8, 8], sizes = [8, 8], strides = [1, 1]} : vector<16x96xf32> to vector<8x8xf32>
    %37 = vector.extract_strided_slice %30 {offsets = [8, 16], sizes = [8, 8], strides = [1, 1]} : vector<16x96xf32> to vector<8x8xf32>
    %38 = vector.extract_strided_slice %30 {offsets = [8, 24], sizes = [8, 8], strides = [1, 1]} : vector<16x96xf32> to vector<8x8xf32>
    %39 = vector.shape_cast %31 : vector<8x8xf32> to vector<1x8x8xf32>
    %40 = vector.shape_cast %32 : vector<8x8xf32> to vector<1x8x8xf32>
    %41 = vector.shape_cast %33 : vector<8x8xf32> to vector<1x8x8xf32>
    %42 = vector.shape_cast %34 : vector<8x8xf32> to vector<1x8x8xf32>
    %43 = vector.shape_cast %35 : vector<8x8xf32> to vector<1x8x8xf32>
    %44 = vector.shape_cast %36 : vector<8x8xf32> to vector<1x8x8xf32>
    %45 = vector.shape_cast %37 : vector<8x8xf32> to vector<1x8x8xf32>
    %46 = vector.shape_cast %38 : vector<8x8xf32> to vector<1x8x8xf32>
    %47 = tpu.concatenate %39, %40, %41, %42, %43, %44, %45, %46 in 0 : vector<1x8x8xf32>, vector<1x8x8xf32>, vector<1x8x8xf32>, vector<1x8x8xf32>, vector<1x8x8xf32>, vector<1x8x8xf32>, vector<1x8x8xf32>, vector<1x8x8xf32> -> vector<8x8x8xf32>
    %48 = vector.extract_strided_slice %30 {offsets = [0, 32], sizes = [8, 8], strides = [1, 1]} : vector<16x96xf32> to vector<8x8xf32>
    %49 = vector.extract_strided_slice %30 {offsets = [0, 40], sizes = [8, 8], strides = [1, 1]} : vector<16x96xf32> to vector<8x8xf32>
    %50 = vector.extract_strided_slice %30 {offsets = [0, 48], sizes = [8, 8], strides = [1, 1]} : vector<16x96xf32> to vector<8x8xf32>
    %51 = vector.extract_strided_slice %30 {offsets = [0, 56], sizes = [8, 8], strides = [1, 1]} : vector<16x96xf32> to vector<8x8xf32>
    %52 = vector.extract_strided_slice %30 {offsets = [8, 32], sizes = [8, 8], strides = [1, 1]} : vector<16x96xf32> to vector<8x8xf32>
    %53 = vector.extract_strided_slice %30 {offsets = [8, 40], sizes = [8, 8], strides = [1, 1]} : vector<16x96xf32> to vector<8x8xf32>
    %54 = vector.extract_strided_slice %30 {offsets = [8, 48], sizes = [8, 8], strides = [1, 1]} : vector<16x96xf32> to vector<8x8xf32>
    %55 = vector.extract_strided_slice %30 {offsets = [8, 56], sizes = [8, 8], strides = [1, 1]} : vector<16x96xf32> to vector<8x8xf32>
    %56 = vector.shape_cast %48 : vector<8x8xf32> to vector<1x8x8xf32>
    %57 = vector.shape_cast %49 : vector<8x8xf32> to vector<1x8x8xf32>
    %58 = vector.shape_cast %50 : vector<8x8xf32> to vector<1x8x8xf32>
    %59 = vector.shape_cast %51 : vector<8x8xf32> to vector<1x8x8xf32>
    %60 = vector.shape_cast %52 : vector<8x8xf32> to vector<1x8x8xf32>
    %61 = vector.shape_cast %53 : vector<8x8xf32> to vector<1x8x8xf32>
    %62 = vector.shape_cast %54 : vector<8x8xf32> to vector<1x8x8xf32>
    %63 = vector.shape_cast %55 : vector<8x8xf32> to vector<1x8x8xf32>
    %64 = tpu.concatenate %56, %57, %58, %59, %60, %61, %62, %63 in 0 : vector<1x8x8xf32>, vector<1x8x8xf32>, vector<1x8x8xf32>, vector<1x8x8xf32>, vector<1x8x8xf32>, vector<1x8x8xf32>, vector<1x8x8xf32>, vector<1x8x8xf32> -> vector<8x8x8xf32>
    %65 = vector.extract_strided_slice %30 {offsets = [0, 64], sizes = [8, 8], strides = [1, 1]} : vector<16x96xf32> to vector<8x8xf32>
    %66 = vector.extract_strided_slice %30 {offsets = [0, 72], sizes = [8, 8], strides = [1, 1]} : vector<16x96xf32> to vector<8x8xf32>
    %67 = vector.extract_strided_slice %30 {offsets = [0, 80], sizes = [8, 8], strides = [1, 1]} : vector<16x96xf32> to vector<8x8xf32>
    %68 = vector.extract_strided_slice %30 {offsets = [0, 88], sizes = [8, 8], strides = [1, 1]} : vector<16x96xf32> to vector<8x8xf32>
    %69 = vector.extract_strided_slice %30 {offsets = [8, 64], sizes = [8, 8], strides = [1, 1]} : vector<16x96xf32> to vector<8x8xf32>
    %70 = vector.extract_strided_slice %30 {offsets = [8, 72], sizes = [8, 8], strides = [1, 1]} : vector<16x96xf32> to vector<8x8xf32>
    %71 = vector.extract_strided_slice %30 {offsets = [8, 80], sizes = [8, 8], strides = [1, 1]} : vector<16x96xf32> to vector<8x8xf32>
    %72 = vector.extract_strided_slice %30 {offsets = [8, 88], sizes = [8, 8], strides = [1, 1]} : vector<16x96xf32> to vector<8x8xf32>
    %73 = vector.shape_cast %65 : vector<8x8xf32> to vector<1x8x8xf32>
    %74 = vector.shape_cast %66 : vector<8x8xf32> to vector<1x8x8xf32>
    %75 = vector.shape_cast %67 : vector<8x8xf32> to vector<1x8x8xf32>
    %76 = vector.shape_cast %68 : vector<8x8xf32> to vector<1x8x8xf32>
    %77 = vector.shape_cast %69 : vector<8x8xf32> to vector<1x8x8xf32>
    %78 = vector.shape_cast %70 : vector<8x8xf32> to vector<1x8x8xf32>
    %79 = vector.shape_cast %71 : vector<8x8xf32> to vector<1x8x8xf32>
    %80 = vector.shape_cast %72 : vector<8x8xf32> to vector<1x8x8xf32>
    %81 = tpu.concatenate %73, %74, %75, %76, %77, %78, %79, %80 in 0 : vector<1x8x8xf32>, vector<1x8x8xf32>, vector<1x8x8xf32>, vector<1x8x8xf32>, vector<1x8x8xf32>, vector<1x8x8xf32>, vector<1x8x8xf32>, vector<1x8x8xf32> -> vector<8x8x8xf32>
    %82 = arith.truncf %47 : vector<8x8x8xf32> to vector<8x8x8xbf16>
    %83 = arith.truncf %64 : vector<8x8x8xf32> to vector<8x8x8xbf16>
    "tpu.trace_start"() <{level = 10 : i32, message = "bqd,bkd->bqk"}> : () -> ()
    %cst_14 = arith.constant dense<0.000000e+00> : vector<8x8x8xf32>
    %84 = tpu.matmul %82, %83, %cst_14 {dimension_numbers = #tpu.dot_dimension_numbers<[2], [2], [1], [1], [0, 0, 0, 1, 1, 1], [0], [0]>} : vector<8x8x8xbf16>, vector<8x8x8xbf16>, vector<8x8x8xf32> -> vector<8x8x8xf32>
    "tpu.trace_stop"() : () -> ()
    %cst_15 = arith.constant dense<0xFF800000> : vector<8x8xf32>
    %85 = vector.multi_reduction <maximumf>, %84, %cst_15 [2] : vector<8x8x8xf32> to vector<8x8xf32>
    %86 = vector.shape_cast %85 : vector<8x8xf32> to vector<8x8x1xf32>
    %87 = vector.broadcast %86 : vector<8x8x1xf32> to vector<8x8x8xf32>
    %88 = arith.subf %84, %87 : vector<8x8x8xf32>
    %89 = math.exp %88 : vector<8x8x8xf32>
    %cst_16 = arith.constant dense<0.000000e+00> : vector<8x8xf32>
    %90 = vector.multi_reduction <add>, %89, %cst_16 [2] : vector<8x8x8xf32> to vector<8x8xf32>
    %91 = vector.shape_cast %90 : vector<8x8xf32> to vector<8x8x1xf32>
    %92 = tpu.reciprocal %91 {approx = true} : vector<8x8x1xf32> -> vector<8x8x1xf32>
    %93 = vector.broadcast %92 : vector<8x8x1xf32> to vector<8x8x8xf32>
    %94 = arith.mulf %89, %93 : vector<8x8x8xf32>
    %95 = arith.truncf %94 : vector<8x8x8xf32> to vector<8x8x8xbf16>
    %96 = arith.truncf %81 : vector<8x8x8xf32> to vector<8x8x8xbf16>
    "tpu.trace_start"() <{level = 10 : i32, message = "bqk,bkd->bqd"}> : () -> ()
    %cst_17 = arith.constant dense<0.000000e+00> : vector<8x8x8xf32>
    %97 = tpu.matmul %95, %96, %cst_17 {dimension_numbers = #tpu.dot_dimension_numbers<[2], [1], [1], [2], [0, 0, 0, 1, 1, 2], [0], [0]>} : vector<8x8x8xbf16>, vector<8x8x8xbf16>, vector<8x8x8xf32> -> vector<8x8x8xf32>
    "tpu.trace_stop"() : () -> ()
    %98 = vector.extract_strided_slice %97 {offsets = [0, 0, 0], sizes = [1, 8, 8], strides = [1, 1, 1]} : vector<8x8x8xf32> to vector<1x8x8xf32>
    %99 = vector.shape_cast %98 : vector<1x8x8xf32> to vector<8x8xf32>
    %100 = vector.extract_strided_slice %97 {offsets = [1, 0, 0], sizes = [1, 8, 8], strides = [1, 1, 1]} : vector<8x8x8xf32> to vector<1x8x8xf32>
    %101 = vector.shape_cast %100 : vector<1x8x8xf32> to vector<8x8xf32>
    %102 = vector.extract_strided_slice %97 {offsets = [2, 0, 0], sizes = [1, 8, 8], strides = [1, 1, 1]} : vector<8x8x8xf32> to vector<1x8x8xf32>
    %103 = vector.shape_cast %102 : vector<1x8x8xf32> to vector<8x8xf32>
    %104 = vector.extract_strided_slice %97 {offsets = [3, 0, 0], sizes = [1, 8, 8], strides = [1, 1, 1]} : vector<8x8x8xf32> to vector<1x8x8xf32>
    %105 = vector.shape_cast %104 : vector<1x8x8xf32> to vector<8x8xf32>
    %106 = tpu.concatenate %99, %101, %103, %105 in 1 : vector<8x8xf32>, vector<8x8xf32>, vector<8x8xf32>, vector<8x8xf32> -> vector<8x32xf32>
    %107 = vector.extract_strided_slice %97 {offsets = [4, 0, 0], sizes = [1, 8, 8], strides = [1, 1, 1]} : vector<8x8x8xf32> to vector<1x8x8xf32>
    %108 = vector.shape_cast %107 : vector<1x8x8xf32> to vector<8x8xf32>
    %109 = vector.extract_strided_slice %97 {offsets = [5, 0, 0], sizes = [1, 8, 8], strides = [1, 1, 1]} : vector<8x8x8xf32> to vector<1x8x8xf32>
    %110 = vector.shape_cast %109 : vector<1x8x8xf32> to vector<8x8xf32>
    %111 = vector.extract_strided_slice %97 {offsets = [6, 0, 0], sizes = [1, 8, 8], strides = [1, 1, 1]} : vector<8x8x8xf32> to vector<1x8x8xf32>
    %112 = vector.shape_cast %111 : vector<1x8x8xf32> to vector<8x8xf32>
    %113 = vector.extract_strided_slice %97 {offsets = [7, 0, 0], sizes = [1, 8, 8], strides = [1, 1, 1]} : vector<8x8x8xf32> to vector<1x8x8xf32>
    %114 = vector.shape_cast %113 : vector<1x8x8xf32> to vector<8x8xf32>
    %115 = tpu.concatenate %108, %110, %112, %114 in 1 : vector<8x8xf32>, vector<8x8xf32>, vector<8x8xf32>, vector<8x8xf32> -> vector<8x32xf32>
    %116 = tpu.concatenate %106, %115 in 0 : vector<8x32xf32>, vector<8x32xf32> -> vector<16x32xf32>
    %117 = arith.truncf %116 : vector<16x32xf32> to vector<16x32xbf16>
    %c0_18 = arith.constant 0 : index
    %c0_19 = arith.constant 0 : index
    %118 = vector.load %arg6[%c0_18, %c0_19] : memref<32x32xbf16, #tpu.memory_space<vmem>>, vector<32x32xbf16>
    %cst_20 = arith.constant dense<0.000000e+00> : vector<16x32xf32>
    %119 = tpu.matmul %117, %118, %cst_20 {dimension_numbers = #tpu.dot_dimension_numbers<[1], [0], [0], [1], [0, 0, 1, 1], [], []>} : vector<16x32xbf16>, vector<32x32xbf16>, vector<16x32xf32> -> vector<16x32xf32>
    %c0_21 = arith.constant 0 : index
    %c0_22 = arith.constant 0 : index
    %120 = vector.load %arg7[%c0_21, %c0_22] : memref<1x32xf32, #tpu.memory_space<vmem>>, vector<1x32xf32>
    %121 = vector.broadcast %120 : vector<1x32xf32> to vector<16x32xf32>
    %122 = arith.addf %119, %121 : vector<16x32xf32>
    %123 = arith.addf %0, %122 : vector<16x32xf32>
    %c0_23 = arith.constant 0 : index
    %c0_24 = arith.constant 0 : index
    %124 = vector.load %arg8[%c0_23, %c0_24] : memref<1x32xf32, #tpu.memory_space<vmem>>, vector<1x32xf32>
    %c0_25 = arith.constant 0 : index
    %c0_26 = arith.constant 0 : index
    %125 = vector.load %arg9[%c0_25, %c0_26] : memref<1x32xf32, #tpu.memory_space<vmem>>, vector<1x32xf32>
    %cst_27 = arith.constant dense<0.000000e+00> : vector<16xf32>
    %126 = vector.multi_reduction <add>, %123, %cst_27 [1] : vector<16x32xf32> to vector<16xf32>
    %127 = vector.shape_cast %126 : vector<16xf32> to vector<16x1xf32>
    %cst_28 = arith.constant 3.200000e+01 : f32
    %128 = vector.broadcast %cst_28 : f32 to vector<16x1xf32>
    %129 = arith.divf %127, %128 : vector<16x1xf32>
    %130 = vector.broadcast %129 : vector<16x1xf32> to vector<16x32xf32>
    %131 = arith.subf %123, %130 : vector<16x32xf32>
    %132 = arith.mulf %131, %131 : vector<16x32xf32>
    %cst_29 = arith.constant dense<0.000000e+00> : vector<16xf32>
    %133 = vector.multi_reduction <add>, %132, %cst_29 [1] : vector<16x32xf32> to vector<16xf32>
    %134 = vector.shape_cast %133 : vector<16xf32> to vector<16x1xf32>
    %cst_30 = arith.constant 3.200000e+01 : f32
    %135 = vector.broadcast %cst_30 : f32 to vector<16x1xf32>
    %136 = arith.divf %134, %135 : vector<16x1xf32>
    %137 = vector.broadcast %129 : vector<16x1xf32> to vector<16x32xf32>
    %138 = arith.subf %123, %137 : vector<16x32xf32>
    %cst_31 = arith.constant 9.99999997E-7 : f32
    %139 = vector.broadcast %cst_31 : f32 to vector<16x1xf32>
    %140 = arith.addf %136, %139 : vector<16x1xf32>
    %141 = math.rsqrt %140 : vector<16x1xf32>
    %142 = vector.broadcast %141 : vector<16x1xf32> to vector<16x32xf32>
    %143 = arith.mulf %138, %142 : vector<16x32xf32>
    %144 = vector.broadcast %124 : vector<1x32xf32> to vector<16x32xf32>
    %145 = arith.mulf %143, %144 : vector<16x32xf32>
    %146 = vector.broadcast %125 : vector<1x32xf32> to vector<16x32xf32>
    %147 = arith.addf %145, %146 : vector<16x32xf32>
    %148 = arith.truncf %147 : vector<16x32xf32> to vector<16x32xbf16>
    %c0_32 = arith.constant 0 : index
    %c0_33 = arith.constant 0 : index
    %149 = vector.load %arg10[%c0_32, %c0_33] : memref<32x128xbf16, #tpu.memory_space<vmem>>, vector<32x128xbf16>
    %cst_34 = arith.constant dense<0.000000e+00> : vector<16x128xf32>
    %150 = tpu.matmul %148, %149, %cst_34 {dimension_numbers = #tpu.dot_dimension_numbers<[1], [0], [0], [1], [0, 0, 1, 1], [], []>} : vector<16x32xbf16>, vector<32x128xbf16>, vector<16x128xf32> -> vector<16x128xf32>
    %c0_35 = arith.constant 0 : index
    %c0_36 = arith.constant 0 : index
    %151 = vector.load %arg11[%c0_35, %c0_36] : memref<1x128xf32, #tpu.memory_space<vmem>>, vector<1x128xf32>
    %152 = vector.broadcast %151 : vector<1x128xf32> to vector<16x128xf32>
    %153 = arith.addf %150, %152 : vector<16x128xf32>
    %154 = arith.mulf %153, %153 : vector<16x128xf32>
    %155 = arith.mulf %153, %154 : vector<16x128xf32>
    %cst_37 = arith.constant 4.471500e-02 : f32
    %156 = vector.broadcast %cst_37 : f32 to vector<16x128xf32>
    %157 = arith.mulf %156, %155 : vector<16x128xf32>
    %158 = arith.addf %153, %157 : vector<16x128xf32>
    %cst_38 = arith.constant 0.797884583 : f32
    %159 = vector.broadcast %cst_38 : f32 to vector<16x128xf32>
    %160 = arith.mulf %159, %158 : vector<16x128xf32>
    %161 = math.tanh %160 : vector<16x128xf32>
    %cst_39 = arith.constant 1.000000e+00 : f32
    %162 = vector.broadcast %cst_39 : f32 to vector<16x128xf32>
    %163 = arith.addf %162, %161 : vector<16x128xf32>
    %cst_40 = arith.constant 5.000000e-01 : f32
    %164 = vector.broadcast %cst_40 : f32 to vector<16x128xf32>
    %165 = arith.mulf %164, %163 : vector<16x128xf32>
    %166 = arith.mulf %153, %165 : vector<16x128xf32>
    %167 = arith.truncf %166 : vector<16x128xf32> to vector<16x128xbf16>
    %c0_41 = arith.constant 0 : index
    %c0_42 = arith.constant 0 : index
    %168 = vector.load %arg12[%c0_41, %c0_42] : memref<128x32xbf16, #tpu.memory_space<vmem>>, vector<128x32xbf16>
    %cst_43 = arith.constant dense<0.000000e+00> : vector<16x32xf32>
    %169 = tpu.matmul %167, %168, %cst_43 {dimension_numbers = #tpu.dot_dimension_numbers<[1], [0], [0], [1], [0, 0, 1, 1], [], []>} : vector<16x128xbf16>, vector<128x32xbf16>, vector<16x32xf32> -> vector<16x32xf32>
    %c0_44 = arith.constant 0 : index
    %c0_45 = arith.constant 0 : index
    %170 = vector.load %arg13[%c0_44, %c0_45] : memref<1x32xf32, #tpu.memory_space<vmem>>, vector<1x32xf32>
    %171 = vector.broadcast %170 : vector<1x32xf32> to vector<16x32xf32>
    %172 = arith.addf %169, %171 : vector<16x32xf32>
    %173 = arith.addf %123, %172 : vector<16x32xf32>
    %c0_46 = arith.constant 0 : index
    %c0_47 = arith.constant 0 : index
    %174 = vector.load %arg14[%c0_46, %c0_47] : memref<16x32xf32, #tpu.memory_space<vmem>>, vector<16x32xf32>
    tpu.vector_store %arg14[%c0_46, %c0_47], %173 {strides = array<i32>} : memref<16x32xf32, #tpu.memory_space<vmem>>, vector<16x32xf32>,
    return
  }
  func.func @transform_0(%arg0: i32) -> (i32, i32) {
    %c0_i32 = arith.constant 0 : i32
    %c0_i32_0 = arith.constant 0 : i32
    %c0_i32_1 = arith.constant 0 : i32
    return %c0_i32, %c0_i32_0 : i32, i32
  }
  func.func @transform_1(%arg0: i32) -> (i32, i32) {
    %c0_i32 = arith.constant 0 : i32
    %c0_i32_0 = arith.constant 0 : i32
    %c0_i32_1 = arith.constant 0 : i32
    return %c0_i32, %c0_i32_0 : i32, i32
  }
  func.func @transform_2(%arg0: i32) -> (i32, i32) {
    %c0_i32 = arith.constant 0 : i32
    %c0_i32_0 = arith.constant 0 : i32
    %c0_i32_1 = arith.constant 0 : i32
    return %c0_i32, %c0_i32_0 : i32, i32
  }
  func.func @transform_3(%arg0: i32) -> (i32, i32) {
    %c0_i32 = arith.constant 0 : i32
    %c0_i32_0 = arith.constant 0 : i32
    %c0_i32_1 = arith.constant 0 : i32
    return %c0_i32, %c0_i32_0 : i32, i32
  }
  func.func @transform_4(%arg0: i32) -> (i32, i32) {
    %c0_i32 = arith.constant 0 : i32
    %c0_i32_0 = arith.constant 0 : i32
    %c0_i32_1 = arith.constant 0 : i32
    return %c0_i32, %c0_i32_0 : i32, i32
  }
  func.func @transform_5(%arg0: i32) -> (i32, i32) {
    %c0_i32 = arith.constant 0 : i32
    %c0_i32_0 = arith.constant 0 : i32
    %c0_i32_1 = arith.constant 0 : i32
    return %c0_i32, %c0_i32_0 : i32, i32
  }
  func.func @transform_6(%arg0: i32) -> (i32, i32) {
    %c0_i32 = arith.constant 0 : i32
    %c0_i32_0 = arith.constant 0 : i32
    %c0_i32_1 = arith.constant 0 : i32
    return %c0_i32, %c0_i32_0 : i32, i32
  }
  func.func @transform_7(%arg0: i32) -> (i32, i32) {
    %c0_i32 = arith.constant 0 : i32
    %c0_i32_0 = arith.constant 0 : i32
    %c0_i32_1 = arith.constant 0 : i32
    return %c0_i32, %c0_i32_0 : i32, i32
  }
  func.func @transform_8(%arg0: i32) -> (i32, i32) {
    %c0_i32 = arith.constant 0 : i32
    %c0_i32_0 = arith.constant 0 : i32
    %c0_i32_1 = arith.constant 0 : i32
    return %c0_i32, %c0_i32_0 : i32, i32
  }
  func.func @transform_9(%arg0: i32) -> (i32, i32) {
    %c0_i32 = arith.constant 0 : i32
    %c0_i32_0 = arith.constant 0 : i32
    %c0_i32_1 = arith.constant 0 : i32
    return %c0_i32, %c0_i32_0 : i32, i32
  }
  func.func @transform_10(%arg0: i32) -> (i32, i32) {
    %c0_i32 = arith.constant 0 : i32
    %c0_i32_0 = arith.constant 0 : i32
    %c0_i32_1 = arith.constant 0 : i32
    return %c0_i32, %c0_i32_0 : i32, i32
  }
  func.func @transform_11(%arg0: i32) -> (i32, i32) {
    %c0_i32 = arith.constant 0 : i32
    %c0_i32_0 = arith.constant 0 : i32
    %c0_i32_1 = arith.constant 0 : i32
    return %c0_i32, %c0_i32_0 : i32, i32
  }
  func.func @transform_12(%arg0: i32) -> (i32, i32) {
    %c0_i32 = arith.constant 0 : i32
    %c0_i32_0 = arith.constant 0 : i32
    %c0_i32_1 = arith.constant 0 : i32
    return %c0_i32, %c0_i32_0 : i32, i32
  }
  func.func @transform_13(%arg0: i32) -> (i32, i32) {
    %c0_i32 = arith.constant 0 : i32
    %c0_i32_0 = arith.constant 0 : i32
    %c0_i32_1 = arith.constant 0 : i32
    return %c0_i32, %c0_i32_0 : i32, i32
  }
}

</mosaic_0001>

<llo_original>
// kernel: tpu_custom_call.1
$region0: #{tpu_custom_call.1}
  #allocation0 [shape = 'u32[]', space=smem, size = 0x4, offset = 0x4, fixed_abs, tag = 'smem constant byte address 0x4 - core index']
  #allocation1 [shape = 'u32[144,128]{1,0:T(1,128)}', space=vmem, size = 0x12000, scoped, tag = 'internal scratch']
  %s0 = inlined_call_operand.vmem [shape: f32[16,32], index: 0, kind: input, shape index: {}]
  %s1 = inlined_call_operand.vmem [shape: f32[1,32], index: 1, kind: input, shape index: {}]
  %s2 = inlined_call_operand.vmem [shape: f32[1,32], index: 2, kind: input, shape index: {}]
  %s3 = inlined_call_operand.vmem [shape: bf16[32,96], index: 3, kind: input, shape index: {}]
  %s4 = inlined_call_operand.vmem [shape: f32[1,96], index: 4, kind: input, shape index: {}]
  %s5 = inlined_call_operand.vmem [shape: bf16[32,32], index: 5, kind: input, shape index: {}]
  %s6 = inlined_call_operand.vmem [shape: f32[1,32], index: 6, kind: input, shape index: {}]
  %s7 = inlined_call_operand.vmem [shape: f32[1,32], index: 7, kind: input, shape index: {}]
  %s8 = inlined_call_operand.vmem [shape: f32[1,32], index: 8, kind: input, shape index: {}]
  %s9 = inlined_call_operand.vmem [shape: bf16[32,128], index: 9, kind: input, shape index: {}]
  %s10 = inlined_call_operand.vmem [shape: f32[1,128], index: 10, kind: input, shape index: {}]
  %s11 = inlined_call_operand.vmem [shape: bf16[128,32], index: 11, kind: input, shape index: {}]
  %s12 = inlined_call_operand.vmem [shape: f32[1,32], index: 12, kind: input, shape index: {}]
  %s13 = inlined_call_operand.hbm [shape: f32[16,32], index: 13, kind: output, shape index: {}]
  %s14 = sld [smem:[#allocation0]]
  $region62: #{tpu_custom_call.1} parent=0
    _
  %s16 = ssub.s32 1, %s14
  %s17 = scalar_select 0, %s16, %s14
  $region1: #{tpu_custom_call.1} parent=0
    #allocation2 [shape = 'u8[8192]{0}', space=vmem, size = 0x2000, scoped, tag = 'output window, operand 0, single buffered']
    #allocation3 [shape = 's32[1]{0}', space=sflag, size = 0x4, scoped, tag = 'scoped memory for tpu_custom_call.1']
    %18 = vsyncpa [#allocation3], 0
    // Predicated region
    $region2: #{tpu_custom_call.1} parent=1 // pred_check
      _
    $region3: #{tpu_custom_call.1} parent=1 // pred_check_branch
      %20 = sbr.rel (0) target = $region5
    $region4: #{tpu_custom_call.1} parent=1 // pred_region
      _
    $region5: #{tpu_custom_call.1} parent=1 // pred_fallthru
      _
    // Predicated region
    $region6: #{tpu_custom_call.1} parent=1 // pred_check
      _
    $region7: #{tpu_custom_call.1} parent=1 // pred_check_branch
      %22 = sbr.rel (0) target = $region9
    $region8: #{tpu_custom_call.1} parent=1 // pred_region
      _
    $region9: #{tpu_custom_call.1} parent=1 // pred_fallthru
      _
    // Predicated region
    $region10: #{tpu_custom_call.1} parent=1 // pred_check
      _
    $region11: #{tpu_custom_call.1} parent=1 // pred_check_branch
      %24 = sbr.rel (0) target = $region13
    $region12: #{tpu_custom_call.1} parent=1 // pred_region
      _
    $region13: #{tpu_custom_call.1} parent=1 // pred_fallthru
      _
    // Predicated region
    $region14: #{tpu_custom_call.1} parent=1 // pred_check
      _
    $region15: #{tpu_custom_call.1} parent=1 // pred_check_branch
      %26 = sbr.rel (0) target = $region17
    $region16: #{tpu_custom_call.1} parent=1 // pred_region
      _
    $region17: #{tpu_custom_call.1} parent=1 // pred_fallthru
      _
    // Predicated region
    $region18: #{tpu_custom_call.1} parent=1 // pred_check
      _
    $region19: #{tpu_custom_call.1} parent=1 // pred_check_branch
      %28 = sbr.rel (0) target = $region21
    $region20: #{tpu_custom_call.1} parent=1 // pred_region
      _
    $region21: #{tpu_custom_call.1} parent=1 // pred_fallthru
      _
    // Predicated region
    $region22: #{tpu_custom_call.1} parent=1 // pred_check
      _
    $region23: #{tpu_custom_call.1} parent=1 // pred_check_branch
      %30 = sbr.rel (0) target = $region25
    $region24: #{tpu_custom_call.1} parent=1 // pred_region
      _
    $region25: #{tpu_custom_call.1} parent=1 // pred_fallthru
      _
    // Predicated region
    $region26: #{tpu_custom_call.1} parent=1 // pred_check
      _
    $region27: #{tpu_custom_call.1} parent=1 // pred_check_branch
      %32 = sbr.rel (0) target = $region29
    $region28: #{tpu_custom_call.1} parent=1 // pred_region
      _
    $region29: #{tpu_custom_call.1} parent=1 // pred_fallthru
      _
    // Predicated region
    $region30: #{tpu_custom_call.1} parent=1 // pred_check
      _
    $region31: #{tpu_custom_call.1} parent=1 // pred_check_branch
      %34 = sbr.rel (0) target = $region33
    $region32: #{tpu_custom_call.1} parent=1 // pred_region
      _
    $region33: #{tpu_custom_call.1} parent=1 // pred_fallthru
      _
    // Predicated region
    $region34: #{tpu_custom_call.1} parent=1 // pred_check
      _
    $region35: #{tpu_custom_call.1} parent=1 // pred_check_branch
      %36 = sbr.rel (0) target = $region37
    $region36: #{tpu_custom_call.1} parent=1 // pred_region
      _
    $region37: #{tpu_custom_call.1} parent=1 // pred_fallthru
      _
    // Predicated region
    $region38: #{tpu_custom_call.1} parent=1 // pred_check
      _
    $region39: #{tpu_custom_call.1} parent=1 // pred_check_branch
      %38 = sbr.rel (0) target = $region41
    $region40: #{tpu_custom_call.1} parent=1 // pred_region
      _
    $region41: #{tpu_custom_call.1} parent=1 // pred_fallthru
      _
    // Predicated region
    $region42: #{tpu_custom_call.1} parent=1 // pred_check
      _
    $region43: #{tpu_custom_call.1} parent=1 // pred_check_branch
      %40 = sbr.rel (0) target = $region45
    $region44: #{tpu_custom_call.1} parent=1 // pred_region
      _
    $region45: #{tpu_custom_call.1} parent=1 // pred_fallthru
      _
    // Predicated region
    $region46: #{tpu_custom_call.1} parent=1 // pred_check
      _
    $region47: #{tpu_custom_call.1} parent=1 // pred_check_branch
      %42 = sbr.rel (0) target = $region49
    $region48: #{tpu_custom_call.1} parent=1 // pred_region
      _
    $region49: #{tpu_custom_call.1} parent=1 // pred_fallthru
      _
    // Predicated region
    $region50: #{tpu_custom_call.1} parent=1 // pred_check
      _
    $region51: #{tpu_custom_call.1} parent=1 // pred_check_branch
      %44 = sbr.rel (0) target = $region53
    $region52: #{tpu_custom_call.1} parent=1 // pred_region
      _
    $region53: #{tpu_custom_call.1} parent=1 // pred_fallthru
      _
    %v46 = vld [vmem:[%s0] sm:$0xff]
    %v47 = vld [vmem:[%s0 + $0x8] sm:$0xff]
    %v48 = vld [vmem:[%s1] sm:$0x1]
    %v49 = vld [vmem:[%s2] sm:$0x1]
    %vm50 = vcmask 261120
    %v51 = vsel %vm50, %v46, 0.0
    %52 = vadd.xlane.f32.xlu0 %v51
    %v53 = vpop.xlane.xlu0 %52
    %v54 = vsel %vm50, %v47, 0.0
    %55 = vadd.xlane.f32.xlu0 %v54
    %v56 = vpop.xlane.xlu0 %55
    %v57 = vrcp.pop 32.0
    %v58 = vmul.f32 %v53, %v57
    %v59 = vmul.f32 %v56, %v57
    %v60 = vsub.f32 %v46, %v58
    %v61 = vsub.f32 %v47, %v59
    %v62 = vmul.f32 %v60, %v60
    %v63 = vmul.f32 %v61, %v61
    %v64 = vsel %vm50, %v62, 0.0
    %65 = vadd.xlane.f32.xlu0 %v64
    %v66 = vpop.xlane.xlu0 %65
    %v67 = vsel %vm50, %v63, 0.0
    %68 = vadd.xlane.f32.xlu0 %v67
    %v69 = vpop.xlane.xlu0 %68
    %v70 = vmul.f32 %v66, %v57
    %v71 = vmul.f32 %v69, %v57
    %v72 = vadd.f32 %v70, 1e-06
    %v73 = vadd.f32 %v71, 1e-06
    %v74 = vrsqrt.pop %v72
    %v75 = vrsqrt.pop %v73
    %v76 = vmul.f32 %v60, %v74
    %v77 = vmul.f32 %v61, %v75
    %v79 = vlaneseq
    %v80 = vshrl.u32 %v79, 7
    %v81 = vsub.s32 0, %v80
    %v82 = vrot.slane %v48, %v81
    %v84 = vmul.f32 %v76, %v82
    %v85 = vmul.f32 %v77, %v82
    %v87 = vlaneseq
    %v88 = vshrl.u32 %v87, 7
    %v89 = vsub.s32 0, %v88
    %v90 = vrot.slane %v49, %v89
    %v92 = vadd.f32 %v84, %v90
    %v93 = vadd.f32 %v85, %v90
    %v94 = vpack.c.bf16 %v93, %v92
    %v95 = vld [vmem:[%s3] sm:$0xf]
    %v96 = vld [vmem:[%s3 + $0x4] sm:$0xf]
    %v97 = vld [vmem:[%s3 + $0x8] sm:$0xf]
    %v98 = vld [vmem:[%s3 + $0xc] sm:$0xf]
    %v99 = vld [vmem:[%s4] sm:$0x1]
    %v101 = vlaneseq
    %v102 = vshrl.u32 %v101, 7
    %v103 = vsub.s32 0, %v102
    %v104 = vrot.slane %v99, %v103
    %v110 = vunpack.c.l.b16 %v95
    %v111 = vunpack.c.l.b16 %v96
    %v112 = vunpack.c.l.b16 %v97
    %v113 = vunpack.c.l.b16 %v98
    %v114 = vpack.c.b16 %v111, %v110
    %v115 = vpack.c.b16 %v113, %v112
    %v119 = vsel %vm50, %v94, 0
    %121 = vmatprep.subr.bf16.mxu0 0
    %122 = vmatpush1.bf16.msra.mxu0 0
    %123 = vmatprep.subr.bf16.mxu0 0
    %124 = vmatpush1.bf16.msra.mxu0 0
    %125 = vmatprep.subr.bf16.mxu0 0
    %126 = vmatpush1.bf16.msra.mxu0 0
    %127 = vmatprep.subr.bf16.mxu0 0
    %128 = vmatpush1.bf16.msra.mxu0 0
    %129 = vmatprep.subr.bf16.mxu0 0
    %130 = vmatpush1.bf16.msra.mxu0 0
    %131 = vmatprep.subr.bf16.mxu0 0
    %132 = vmatpush1.bf16.msra.mxu0 0
    %133 = vmatprep.subr.bf16.mxu0 0
    %134 = vmatpush1.bf16.msra.mxu0 %v115
    %135 = vmatprep.subr.bf16.mxu0 0
    %136 = vmatpush1.bf16.msra.mxu0 %v114
    %137 = vmatprep.subr.bf16.mxu0 0
    %138 = vmatpush2.bf16.msra.mxu0 0
    %139 = vmatprep.subr.bf16.mxu0 0
    %140 = vmatpush2.bf16.msra.mxu0 0
    %141 = vmatprep.subr.bf16.mxu0 0
    %142 = vmatpush2.bf16.msra.mxu0 0
    %143 = vmatprep.subr.bf16.mxu0 0
    %144 = vmatpush2.bf16.msra.mxu0 0
    %145 = vmatprep.subr.bf16.mxu0 0
    %146 = vmatpush2.bf16.msra.mxu0 0
    %147 = vmatprep.subr.bf16.mxu0 0
    %148 = vmatpush2.bf16.msra.mxu0 0
    %149 = vmatprep.subr.bf16.mxu0 0
    %150 = vmatpush2.bf16.msra.mxu0 0
    %151 = vmatprep.subr.bf16.mxu0 0
    %152 = vmatpush2.bf16.msra.mxu0 0
    %153 = vmatprep.mubr.bf16.mxu0 0
    %154 = vmatmul.mubr.bf16.gmra.mxu0 %v119
    %v155 = vpop.f32.mrf.mxu0
    %v156 = vadd.f32 %v104, %v155
    %v157 = vpop.f32.mrf.mxu0
    %v158 = vpop.f32.mrf.mxu0
    %v159 = vadd.f32 %v104, %v158
    %v160 = vpop.f32.mrf.mxu0
    %161 = vdwg.mxu0
    %163 = vrot.lane.b32.xlu0 %v156, 120
    %v164 = vpop.permute.xlu0 %163
    %166 = vrot.lane.b32.xlu0 %v156, 112
    %v167 = vpop.permute.xlu0 %166
    %169 = vrot.lane.b32.xlu0 %v156, 104
    %v170 = vpop.permute.xlu0 %169
    %173 = vrot.lane.b32.xlu0 %v159, 120
    %v174 = vpop.permute.xlu0 %173
    %176 = vrot.lane.b32.xlu0 %v159, 112
    %v177 = vpop.permute.xlu0 %176
    %179 = vrot.lane.b32.xlu0 %v159, 104
    %v180 = vpop.permute.xlu0 %179
    %v182 = vpack.c.bf16 %v156, %v156
    %v183 = vpack.c.bf16 %v164, %v164
    %v184 = vpack.c.bf16 %v167, %v167
    %v185 = vpack.c.bf16 %v170, %v170
    %v186 = vpack.c.bf16 %v159, %v159
    %v187 = vpack.c.bf16 %v174, %v174
    %v188 = vpack.c.bf16 %v177, %v177
    %v189 = vpack.c.bf16 %v180, %v180
    %191 = vrot.lane.b32.xlu0 %v182, 96
    %v192 = vpop.permute.xlu0 %191
    %vm193 = vcmask 64512
    %v195 = vsel %vm193, %v182, 0
    %v198 = vsel %vm193, %v192, 0
    %200 = vmatprep.subr.bf16.mxu0 0
    %201 = vmatpush1.bf16.xpose.msra.mxu0 0
    %202 = vmatprep.subr.bf16.mxu0 0
    %203 = vmatpush1.bf16.xpose.msra.mxu0 0
    %204 = vmatprep.subr.bf16.mxu0 0
    %205 = vmatpush1.bf16.xpose.msra.mxu0 0
    %206 = vmatprep.subr.bf16.mxu0 0
    %207 = vmatpush1.bf16.xpose.msra.mxu0 0
    %208 = vmatprep.subr.bf16.mxu0 0
    %209 = vmatpush1.bf16.xpose.msra.mxu0 0
    %210 = vmatprep.subr.bf16.mxu0 0
    %211 = vmatpush1.bf16.xpose.msra.mxu0 0
    %212 = vmatprep.subr.bf16.mxu0 0
    %213 = vmatpush1.bf16.xpose.msra.mxu0 0
    %214 = vmatprep.subr.bf16.mxu0 0
    %215 = vmatpush1.bf16.xpose.msra.mxu0 %v198
    %216 = vmatprep.subr.bf16.mxu0 0
    %217 = vmatpush2.bf16.xpose.msra.mxu0 0
    %218 = vmatprep.subr.bf16.mxu0 0
    %219 = vmatpush2.bf16.xpose.msra.mxu0 0
    %220 = vmatprep.subr.bf16.mxu0 0
    %221 = vmatpush2.bf16.xpose.msra.mxu0 0
    %222 = vmatprep.subr.bf16.mxu0 0
    %223 = vmatpush2.bf16.xpose.msra.mxu0 0
    %224 = vmatprep.subr.bf16.mxu0 0
    %225 = vmatpush2.bf16.xpose.msra.mxu0 0
    %226 = vmatprep.subr.bf16.mxu0 0
    %227 = vmatpush2.bf16.xpose.msra.mxu0 0
    %228 = vmatprep.subr.bf16.mxu0 0
    %229 = vmatpush2.bf16.xpose.msra.mxu0 0
    %230 = vmatprep.subr.bf16.mxu0 0
    %231 = vmatpush2.bf16.xpose.msra.mxu0 0
    %232 = vmatprep.mubr.bf16.mxu0 0
    %233 = vmatmul.mubr.bf16.gmra.mxu0 %v195
    %v234 = vpop.f32.mrf.mxu0
    %v235 = vadd.f32 0.0, %v234
    %v236 = vpop.f32.mrf.mxu0
    %v237 = vpop.f32.mrf.mxu0
    %v238 = vpop.f32.mrf.mxu0
    %239 = vdwg.mxu0
    %241 = vrot.lane.b32.xlu0 %v183, 96
    %v242 = vpop.permute.xlu0 %241
    %v244 = vsel %vm193, %v183, 0
    %v247 = vsel %vm193, %v242, 0
    %249 = vmatprep.subr.bf16.mxu0 0
    %250 = vmatpush1.bf16.xpose.msra.mxu0 0
    %251 = vmatprep.subr.bf16.mxu0 0
    %252 = vmatpush1.bf16.xpose.msra.mxu0 0
    %253 = vmatprep.subr.bf16.mxu0 0
    %254 = vmatpush1.bf16.xpose.msra.mxu0 0
    %255 = vmatprep.subr.bf16.mxu0 0
    %256 = vmatpush1.bf16.xpose.msra.mxu0 0
    %257 = vmatprep.subr.bf16.mxu0 0
    %258 = vmatpush1.bf16.xpose.msra.mxu0 0
    %259 = vmatprep.subr.bf16.mxu0 0
    %260 = vmatpush1.bf16.xpose.msra.mxu0 0
    %261 = vmatprep.subr.bf16.mxu0 0
    %262 = vmatpush1.bf16.xpose.msra.mxu0 0
    %263 = vmatprep.subr.bf16.mxu0 0
    %264 = vmatpush1.bf16.xpose.msra.mxu0 %v247
    %265 = vmatprep.subr.bf16.mxu0 0
    %266 = vmatpush2.bf16.xpose.msra.mxu0 0
    %267 = vmatprep.subr.bf16.mxu0 0
    %268 = vmatpush2.bf16.xpose.msra.mxu0 0
    %269 = vmatprep.subr.bf16.mxu0 0
    %270 = vmatpush2.bf16.xpose.msra.mxu0 0
    %271 = vmatprep.subr.bf16.mxu0 0
    %272 = vmatpush2.bf16.xpose.msra.mxu0 0
    %273 = vmatprep.subr.bf16.mxu0 0
    %274 = vmatpush2.bf16.xpose.msra.mxu0 0
    %275 = vmatprep.subr.bf16.mxu0 0
    %276 = vmatpush2.bf16.xpose.msra.mxu0 0
    %277 = vmatprep.subr.bf16.mxu0 0
    %278 = vmatpush2.bf16.xpose.msra.mxu0 0
    %279 = vmatprep.subr.bf16.mxu0 0
    %280 = vmatpush2.bf16.xpose.msra.mxu0 0
    %281 = vmatprep.mubr.bf16.mxu0 0
    %282 = vmatmul.mubr.bf16.gmra.mxu0 %v244
    %v283 = vpop.f32.mrf.mxu0
    %v284 = vadd.f32 0.0, %v283
    %v285 = vpop.f32.mrf.mxu0
    %v286 = vpop.f32.mrf.mxu0
    %v287 = vpop.f32.mrf.mxu0
    %288 = vdwg.mxu0
    %290 = vrot.lane.b32.xlu0 %v184, 96
    %v291 = vpop.permute.xlu0 %290
    %v293 = vsel %vm193, %v184, 0
    %v296 = vsel %vm193, %v291, 0
    %298 = vmatprep.subr.bf16.mxu0 0
    %299 = vmatpush1.bf16.xpose.msra.mxu0 0
    %300 = vmatprep.subr.bf16.mxu0 0
    %301 = vmatpush1.bf16.xpose.msra.mxu0 0
    %302 = vmatprep.subr.bf16.mxu0 0
    %303 = vmatpush1.bf16.xpose.msra.mxu0 0
    %304 = vmatprep.subr.bf16.mxu0 0
    %305 = vmatpush1.bf16.xpose.msra.mxu0 0
    %306 = vmatprep.subr.bf16.mxu0 0
    %307 = vmatpush1.bf16.xpose.msra.mxu0 0
    %308 = vmatprep.subr.bf16.mxu0 0
    %309 = vmatpush1.bf16.xpose.msra.mxu0 0
    %310 = vmatprep.subr.bf16.mxu0 0
    %311 = vmatpush1.bf16.xpose.msra.mxu0 0
    %312 = vmatprep.subr.bf16.mxu0 0
    %313 = vmatpush1.bf16.xpose.msra.mxu0 %v296
    %314 = vmatprep.subr.bf16.mxu0 0
    %315 = vmatpush2.bf16.xpose.msra.mxu0 0
    %316 = vmatprep.subr.bf16.mxu0 0
    %317 = vmatpush2.bf16.xpose.msra.mxu0 0
    %318 = vmatprep.subr.bf16.mxu0 0
    %319 = vmatpush2.bf16.xpose.msra.mxu0 0
    %320 = vmatprep.subr.bf16.mxu0 0
    %321 = vmatpush2.bf16.xpose.msra.mxu0 0
    %322 = vmatprep.subr.bf16.mxu0 0
    %323 = vmatpush2.bf16.xpose.msra.mxu0 0
    %324 = vmatprep.subr.bf16.mxu0 0
    %325 = vmatpush2.bf16.xpose.msra.mxu0 0
    %326 = vmatprep.subr.bf16.mxu0 0
    %327 = vmatpush2.bf16.xpose.msra.mxu0 0
    %328 = vmatprep.subr.bf16.mxu0 0
    %329 = vmatpush2.bf16.xpose.msra.mxu0 0
    %330 = vmatprep.mubr.bf16.mxu0 0
    %331 = vmatmul.mubr.bf16.gmra.mxu0 %v293
    %v332 = vpop.f32.mrf.mxu0
    %v333 = vadd.f32 0.0, %v332
    %v334 = vpop.f32.mrf.mxu0
    %v335 = vpop.f32.mrf.mxu0
    %v336 = vpop.f32.mrf.mxu0
    %337 = vdwg.mxu0
    %339 = vrot.lane.b32.xlu0 %v185, 96
    %v340 = vpop.permute.xlu0 %339
    %v342 = vsel %vm193, %v185, 0
    %v345 = vsel %vm193, %v340, 0
    %347 = vmatprep.subr.bf16.mxu0 0
    %348 = vmatpush1.bf16.xpose.msra.mxu0 0
    %349 = vmatprep.subr.bf16.mxu0 0
    %350 = vmatpush1.bf16.xpose.msra.mxu0 0
    %351 = vmatprep.subr.bf16.mxu0 0
    %352 = vmatpush1.bf16.xpose.msra.mxu0 0
    %353 = vmatprep.subr.bf16.mxu0 0
    %354 = vmatpush1.bf16.xpose.msra.mxu0 0
    %355 = vmatprep.subr.bf16.mxu0 0
    %356 = vmatpush1.bf16.xpose.msra.mxu0 0
    %357 = vmatprep.subr.bf16.mxu0 0
    %358 = vmatpush1.bf16.xpose.msra.mxu0 0
    %359 = vmatprep.subr.bf16.mxu0 0
    %360 = vmatpush1.bf16.xpose.msra.mxu0 0
    %361 = vmatprep.subr.bf16.mxu0 0
    %362 = vmatpush1.bf16.xpose.msra.mxu0 %v345
    %363 = vmatprep.subr.bf16.mxu0 0
    %364 = vmatpush2.bf16.xpose.msra.mxu0 0
    %365 = vmatprep.subr.bf16.mxu0 0
    %366 = vmatpush2.bf16.xpose.msra.mxu0 0
    %367 = vmatprep.subr.bf16.mxu0 0
    %368 = vmatpush2.bf16.xpose.msra.mxu0 0
    %369 = vmatprep.subr.bf16.mxu0 0
    %370 = vmatpush2.bf16.xpose.msra.mxu0 0
    %371 = vmatprep.subr.bf16.mxu0 0
    %372 = vmatpush2.bf16.xpose.msra.mxu0 0
    %373 = vmatprep.subr.bf16.mxu0 0
    %374 = vmatpush2.bf16.xpose.msra.mxu0 0
    %375 = vmatprep.subr.bf16.mxu0 0
    %376 = vmatpush2.bf16.xpose.msra.mxu0 0
    %377 = vmatprep.subr.bf16.mxu0 0
    %378 = vmatpush2.bf16.xpose.msra.mxu0 0
    %379 = vmatprep.mubr.bf16.mxu0 0
    %380 = vmatmul.mubr.bf16.gmra.mxu0 %v342
    %v381 = vpop.f32.mrf.mxu0
    %v382 = vadd.f32 0.0, %v381
    %v383 = vpop.f32.mrf.mxu0
    %v384 = vpop.f32.mrf.mxu0
    %v385 = vpop.f32.mrf.mxu0
    %386 = vdwg.mxu0
    %388 = vrot.lane.b32.xlu0 %v186, 96
    %v389 = vpop.permute.xlu0 %388
    %v391 = vsel %vm193, %v186, 0
    %v394 = vsel %vm193, %v389, 0
    %396 = vmatprep.subr.bf16.mxu0 0
    %397 = vmatpush1.bf16.xpose.msra.mxu0 0
    %398 = vmatprep.subr.bf16.mxu0 0
    %399 = vmatpush1.bf16.xpose.msra.mxu0 0
    %400 = vmatprep.subr.bf16.mxu0 0
    %401 = vmatpush1.bf16.xpose.msra.mxu0 0
    %402 = vmatprep.subr.bf16.mxu0 0
    %403 = vmatpush1.bf16.xpose.msra.mxu0 0
    %404 = vmatprep.subr.bf16.mxu0 0
    %405 = vmatpush1.bf16.xpose.msra.mxu0 0
    %406 = vmatprep.subr.bf16.mxu0 0
    %407 = vmatpush1.bf16.xpose.msra.mxu0 0
    %408 = vmatprep.subr.bf16.mxu0 0
    %409 = vmatpush1.bf16.xpose.msra.mxu0 0
    %410 = vmatprep.subr.bf16.mxu0 0
    %411 = vmatpush1.bf16.xpose.msra.mxu0 %v394
    %412 = vmatprep.subr.bf16.mxu0 0
    %413 = vmatpush2.bf16.xpose.msra.mxu0 0
    %414 = vmatprep.subr.bf16.mxu0 0
    %415 = vmatpush2.bf16.xpose.msra.mxu0 0
    %416 = vmatprep.subr.bf16.mxu0 0
    %417 = vmatpush2.bf16.xpose.msra.mxu0 0
    %418 = vmatprep.subr.bf16.mxu0 0
    %419 = vmatpush2.bf16.xpose.msra.mxu0 0
    %420 = vmatprep.subr.bf16.mxu0 0
    %421 = vmatpush2.bf16.xpose.msra.mxu0 0
    %422 = vmatprep.subr.bf16.mxu0 0
    %423 = vmatpush2.bf16.xpose.msra.mxu0 0
    %424 = vmatprep.subr.bf16.mxu0 0
    %425 = vmatpush2.bf16.xpose.msra.mxu0 0
    %426 = vmatprep.subr.bf16.mxu0 0
    %427 = vmatpush2.bf16.xpose.msra.mxu0 0
    %428 = vmatprep.mubr.bf16.mxu0 0
    %429 = vmatmul.mubr.bf16.gmra.mxu0 %v391
    %v430 = vpop.f32.mrf.mxu0
    %v431 = vadd.f32 0.0, %v430
    %v432 = vpop.f32.mrf.mxu0
    %v433 = vpop.f32.mrf.mxu0
    %v434 = vpop.f32.mrf.mxu0
    %435 = vdwg.mxu0
    %437 = vrot.lane.b32.xlu0 %v187, 96
    %v438 = vpop.permute.xlu0 %437
    %v440 = vsel %vm193, %v187, 0
    %v443 = vsel %vm193, %v438, 0
    %445 = vmatprep.subr.bf16.mxu0 0
    %446 = vmatpush1.bf16.xpose.msra.mxu0 0
    %447 = vmatprep.subr.bf16.mxu0 0
    %448 = vmatpush1.bf16.xpose.msra.mxu0 0
    %449 = vmatprep.subr.bf16.mxu0 0
    %450 = vmatpush1.bf16.xpose.msra.mxu0 0
    %451 = vmatprep.subr.bf16.mxu0 0
    %452 = vmatpush1.bf16.xpose.msra.mxu0 0
    %453 = vmatprep.subr.bf16.mxu0 0
    %454 = vmatpush1.bf16.xpose.msra.mxu0 0
    %455 = vmatprep.subr.bf16.mxu0 0
    %456 = vmatpush1.bf16.xpose.msra.mxu0 0
    %457 = vmatprep.subr.bf16.mxu0 0
    %458 = vmatpush1.bf16.xpose.msra.mxu0 0
    %459 = vmatprep.subr.bf16.mxu0 0
    %460 = vmatpush1.bf16.xpose.msra.mxu0 %v443
    %461 = vmatprep.subr.bf16.mxu0 0
    %462 = vmatpush2.bf16.xpose.msra.mxu0 0
    %463 = vmatprep.subr.bf16.mxu0 0
    %464 = vmatpush2.bf16.xpose.msra.mxu0 0
    %465 = vmatprep.subr.bf16.mxu0 0
    %466 = vmatpush2.bf16.xpose.msra.mxu0 0
    %467 = vmatprep.subr.bf16.mxu0 0
    %468 = vmatpush2.bf16.xpose.msra.mxu0 0
    %469 = vmatprep.subr.bf16.mxu0 0
    %470 = vmatpush2.bf16.xpose.msra.mxu0 0
    %471 = vmatprep.subr.bf16.mxu0 0
    %472 = vmatpush2.bf16.xpose.msra.mxu0 0
    %473 = vmatprep.subr.bf16.mxu0 0
    %474 = vmatpush2.bf16.xpose.msra.mxu0 0
    %475 = vmatprep.subr.bf16.mxu0 0
    %476 = vmatpush2.bf16.xpose.msra.mxu0 0
    %477 = vmatprep.mubr.bf16.mxu0 0
    %478 = vmatmul.mubr.bf16.gmra.mxu0 %v440
    %v479 = vpop.f32.mrf.mxu0
    %v480 = vadd.f32 0.0, %v479
    %v481 = vpop.f32.mrf.mxu0
    %v482 = vpop.f32.mrf.mxu0
    %v483 = vpop.f32.mrf.mxu0
    %484 = vdwg.mxu0
    %486 = vrot.lane.b32.xlu0 %v188, 96
    %v487 = vpop.permute.xlu0 %486
    %v489 = vsel %vm193, %v188, 0
    %v492 = vsel %vm193, %v487, 0
    %494 = vmatprep.subr.bf16.mxu0 0
    %495 = vmatpush1.bf16.xpose.msra.mxu0 0
    %496 = vmatprep.subr.bf16.mxu0 0
    %497 = vmatpush1.bf16.xpose.msra.mxu0 0
    %498 = vmatprep.subr.bf16.mxu0 0
    %499 = vmatpush1.bf16.xpose.msra.mxu0 0
    %500 = vmatprep.subr.bf16.mxu0 0
    %501 = vmatpush1.bf16.xpose.msra.mxu0 0
    %502 = vmatprep.subr.bf16.mxu0 0
    %503 = vmatpush1.bf16.xpose.msra.mxu0 0
    %504 = vmatprep.subr.bf16.mxu0 0
    %505 = vmatpush1.bf16.xpose.msra.mxu0 0
    %506 = vmatprep.subr.bf16.mxu0 0
    %507 = vmatpush1.bf16.xpose.msra.mxu0 0
    %508 = vmatprep.subr.bf16.mxu0 0
    %509 = vmatpush1.bf16.xpose.msra.mxu0 %v492
    %510 = vmatprep.subr.bf16.mxu0 0
    %511 = vmatpush2.bf16.xpose.msra.mxu0 0
    %512 = vmatprep.subr.bf16.mxu0 0
    %513 = vmatpush2.bf16.xpose.msra.mxu0 0
    %514 = vmatprep.subr.bf16.mxu0 0
    %515 = vmatpush2.bf16.xpose.msra.mxu0 0
    %516 = vmatprep.subr.bf16.mxu0 0
    %517 = vmatpush2.bf16.xpose.msra.mxu0 0
    %518 = vmatprep.subr.bf16.mxu0 0
    %519 = vmatpush2.bf16.xpose.msra.mxu0 0
    %520 = vmatprep.subr.bf16.mxu0 0
    %521 = vmatpush2.bf16.xpose.msra.mxu0 0
    %522 = vmatprep.subr.bf16.mxu0 0
    %523 = vmatpush2.bf16.xpose.msra.mxu0 0
    %524 = vmatprep.subr.bf16.mxu0 0
    %525 = vmatpush2.bf16.xpose.msra.mxu0 0
    %526 = vmatprep.mubr.bf16.mxu0 0
    %527 = vmatmul.mubr.bf16.gmra.mxu0 %v489
    %v528 = vpop.f32.mrf.mxu0
    %v529 = vadd.f32 0.0, %v528
    %v530 = vpop.f32.mrf.mxu0
    %v531 = vpop.f32.mrf.mxu0
    %v532 = vpop.f32.mrf.mxu0
    %533 = vdwg.mxu0
    %535 = vrot.lane.b32.xlu0 %v189, 96
    %v536 = vpop.permute.xlu0 %535
    %v538 = vsel %vm193, %v189, 0
    %v541 = vsel %vm193, %v536, 0
    %543 = vmatprep.subr.bf16.mxu0 0
    %544 = vmatpush1.bf16.xpose.msra.mxu0 0
    %545 = vmatprep.subr.bf16.mxu0 0
    %546 = vmatpush1.bf16.xpose.msra.mxu0 0
    %547 = vmatprep.subr.bf16.mxu0 0
    %548 = vmatpush1.bf16.xpose.msra.mxu0 0
    %549 = vmatprep.subr.bf16.mxu0 0
    %550 = vmatpush1.bf16.xpose.msra.mxu0 0
    %551 = vmatprep.subr.bf16.mxu0 0
    %552 = vmatpush1.bf16.xpose.msra.mxu0 0
    %553 = vmatprep.subr.bf16.mxu0 0
    %554 = vmatpush1.bf16.xpose.msra.mxu0 0
    %555 = vmatprep.subr.bf16.mxu0 0
    %556 = vmatpush1.bf16.xpose.msra.mxu0 0
    %557 = vmatprep.subr.bf16.mxu0 0
    %558 = vmatpush1.bf16.xpose.msra.mxu0 %v541
    %559 = vmatprep.subr.bf16.mxu0 0
    %560 = vmatpush2.bf16.xpose.msra.mxu0 0
    %561 = vmatprep.subr.bf16.mxu0 0
    %562 = vmatpush2.bf16.xpose.msra.mxu0 0
    %563 = vmatprep.subr.bf16.mxu0 0
    %564 = vmatpush2.bf16.xpose.msra.mxu0 0
    %565 = vmatprep.subr.bf16.mxu0 0
    %566 = vmatpush2.bf16.xpose.msra.mxu0 0
    %567 = vmatprep.subr.bf16.mxu0 0
    %568 = vmatpush2.bf16.xpose.msra.mxu0 0
    %569 = vmatprep.subr.bf16.mxu0 0
    %570 = vmatpush2.bf16.xpose.msra.mxu0 0
    %571 = vmatprep.subr.bf16.mxu0 0
    %572 = vmatpush2.bf16.xpose.msra.mxu0 0
    %573 = vmatprep.subr.bf16.mxu0 0
    %574 = vmatpush2.bf16.xpose.msra.mxu0 0
    %575 = vmatprep.mubr.bf16.mxu0 0
    %576 = vmatmul.mubr.bf16.gmra.mxu0 %v538
    %v577 = vpop.f32.mrf.mxu0
    %v578 = vadd.f32 0.0, %v577
    %v579 = vpop.f32.mrf.mxu0
    %v580 = vpop.f32.mrf.mxu0
    %v581 = vpop.f32.mrf.mxu0
    %582 = vdwg.mxu0
    %v583 = vsel %vm193, %v235, -inf
    %584 = vmax.xlane.f32.xlu0 %v583
    %v585 = vpop.xlane.xlu0 %584
    %v586 = vsel %vm193, %v284, -inf
    %587 = vmax.xlane.f32.xlu0 %v586
    %v588 = vpop.xlane.xlu0 %587
    %v589 = vsel %vm193, %v333, -inf
    %590 = vmax.xlane.f32.xlu0 %v589
    %v591 = vpop.xlane.xlu0 %590
    %v592 = vsel %vm193, %v382, -inf
    %593 = vmax.xlane.f32.xlu0 %v592
    %v594 = vpop.xlane.xlu0 %593
    %v595 = vsel %vm193, %v431, -inf
    %596 = vmax.xlane.f32.xlu0 %v595
    %v597 = vpop.xlane.xlu0 %596
    %v598 = vsel %vm193, %v480, -inf
    %599 = vmax.xlane.f32.xlu0 %v598
    %v600 = vpop.xlane.xlu0 %599
    %v601 = vsel %vm193, %v529, -inf
    %602 = vmax.xlane.f32.xlu0 %v601
    %v603 = vpop.xlane.xlu0 %602
    %v604 = vsel %vm193, %v578, -inf
    %605 = vmax.xlane.f32.xlu0 %v604
    %v606 = vpop.xlane.xlu0 %605
    %v607 = vsub.f32 %v235, %v585
    %v608 = vsub.f32 %v284, %v588
    %v609 = vsub.f32 %v333, %v591
    %v610 = vsub.f32 %v382, %v594
    %v611 = vsub.f32 %v431, %v597
    %v612 = vsub.f32 %v480, %v600
    %v613 = vsub.f32 %v529, %v603
    %v614 = vsub.f32 %v578, %v606
    %v615 = vmul.f32 %v607, 1.442695
    %v616 = vpow.pop %v615
    %v617 = vmul.f32 %v608, 1.442695
    %v618 = vpow.pop %v617
    %v619 = vmul.f32 %v609, 1.442695
    %v620 = vpow.pop %v619
    %v621 = vmul.f32 %v610, 1.442695
    %v622 = vpow.pop %v621
    %v623 = vmul.f32 %v611, 1.442695
    %v624 = vpow.pop %v623
    %v625 = vmul.f32 %v612, 1.442695
    %v626 = vpow.pop %v625
    %v627 = vmul.f32 %v613, 1.442695
    %v628 = vpow.pop %v627
    %v629 = vmul.f32 %v614, 1.442695
    %v630 = vpow.pop %v629
    %v631 = vsel %vm193, %v616, 0.0
    %632 = vadd.xlane.f32.xlu0 %v631
    %v633 = vpop.xlane.xlu0 %632
    %v634 = vsel %vm193, %v618, 0.0
    %635 = vadd.xlane.f32.xlu0 %v634
    %v636 = vpop.xlane.xlu0 %635
    %v637 = vsel %vm193, %v620, 0.0
    %638 = vadd.xlane.f32.xlu0 %v637
    %v639 = vpop.xlane.xlu0 %638
    %v640 = vsel %vm193, %v622, 0.0
    %641 = vadd.xlane.f32.xlu0 %v640
    %v642 = vpop.xlane.xlu0 %641
    %v643 = vsel %vm193, %v624, 0.0
    %644 = vadd.xlane.f32.xlu0 %v643
    %v645 = vpop.xlane.xlu0 %644
    %v646 = vsel %vm193, %v626, 0.0
    %647 = vadd.xlane.f32.xlu0 %v646
    %v648 = vpop.xlane.xlu0 %647
    %v649 = vsel %vm193, %v628, 0.0
    %650 = vadd.xlane.f32.xlu0 %v649
    %v651 = vpop.xlane.xlu0 %650
    %v652 = vsel %vm193, %v630, 0.0
    %653 = vadd.xlane.f32.xlu0 %v652
    %v654 = vpop.xlane.xlu0 %653
    %v655 = vrcp.pop %v633
    %v656 = vrcp.pop %v636
    %v657 = vrcp.pop %v639
    %v658 = vrcp.pop %v642
    %v659 = vrcp.pop %v645
    %v660 = vrcp.pop %v648
    %v661 = vrcp.pop %v651
    %v662 = vrcp.pop %v654
    %v663 = vmul.f32 %v616, %v655
    %v664 = vmul.f32 %v618, %v656
    %v665 = vmul.f32 %v620, %v657
    %v666 = vmul.f32 %v622, %v658
    %v667 = vmul.f32 %v624, %v659
    %v668 = vmul.f32 %v626, %v660
    %v669 = vmul.f32 %v628, %v661
    %v670 = vmul.f32 %v630, %v662
    %v671 = vpack.c.bf16 %v663, %v663
    %v672 = vpack.c.bf16 %v664, %v664
    %v673 = vpack.c.bf16 %v665, %v665
    %v674 = vpack.c.bf16 %v666, %v666
    %v675 = vpack.c.bf16 %v667, %v667
    %v676 = vpack.c.bf16 %v668, %v668
    %v677 = vpack.c.bf16 %v669, %v669
    %v678 = vpack.c.bf16 %v670, %v670
    %679 = vrot.lane.b32.xlu0 %v182, 64
    %v680 = vpop.permute.xlu0 %679
    %v682 = vsel %vm193, %v671, 0
    %vm684 = vcmask 1043456
    %v686 = vsel %vm684, %v680, 0
    %688 = vmatprep.subr.bf16.mxu0 0
    %689 = vmatpush1.bf16.msra.mxu0 0
    %690 = vmatprep.subr.bf16.mxu0 0
    %691 = vmatpush1.bf16.msra.mxu0 0
    %692 = vmatprep.subr.bf16.mxu0 0
    %693 = vmatpush1.bf16.msra.mxu0 0
    %694 = vmatprep.subr.bf16.mxu0 0
    %695 = vmatpush1.bf16.msra.mxu0 0
    %696 = vmatprep.subr.bf16.mxu0 0
    %697 = vmatpush1.bf16.msra.mxu0 0
    %698 = vmatprep.subr.bf16.mxu0 0
    %699 = vmatpush1.bf16.msra.mxu0 0
    %700 = vmatprep.subr.bf16.mxu0 0
    %701 = vmatpush1.bf16.msra.mxu0 0
    %702 = vmatprep.subr.bf16.mxu0 0
    %703 = vmatpush1.bf16.msra.mxu0 %v686
    %704 = vmatprep.subr.bf16.mxu0 0
    %705 = vmatpush2.bf16.msra.mxu0 0
    %706 = vmatprep.subr.bf16.mxu0 0
    %707 = vmatpush2.bf16.msra.mxu0 0
    %708 = vmatprep.subr.bf16.mxu0 0
    %709 = vmatpush2.bf16.msra.mxu0 0
    %710 = vmatprep.subr.bf16.mxu0 0
    %711 = vmatpush2.bf16.msra.mxu0 0
    %712 = vmatprep.subr.bf16.mxu0 0
    %713 = vmatpush2.bf16.msra.mxu0 0
    %714 = vmatprep.subr.bf16.mxu0 0
    %715 = vmatpush2.bf16.msra.mxu0 0
    %716 = vmatprep.subr.bf16.mxu0 0
    %717 = vmatpush2.bf16.msra.mxu0 0
    %718 = vmatprep.subr.bf16.mxu0 0
    %719 = vmatpush2.bf16.msra.mxu0 0
    %720 = vmatprep.mubr.bf16.mxu0 0
    %721 = vmatmul.mubr.bf16.gmra.mxu0 %v682
    %v722 = vpop.f32.mrf.mxu0
    %v723 = vadd.f32 0.0, %v722
    %v724 = vpop.f32.mrf.mxu0
    %v725 = vpop.f32.mrf.mxu0
    %v726 = vpop.f32.mrf.mxu0
    %727 = vdwg.mxu0
    %728 = vrot.lane.b32.xlu0 %v183, 64
    %v729 = vpop.permute.xlu0 %728
    %v731 = vsel %vm193, %v672, 0
    %v734 = vsel %vm684, %v729, 0
    %736 = vmatprep.subr.bf16.mxu0 0
    %737 = vmatpush1.bf16.msra.mxu0 0
    %738 = vmatprep.subr.bf16.mxu0 0
    %739 = vmatpush1.bf16.msra.mxu0 0
    %740 = vmatprep.subr.bf16.mxu0 0
    %741 = vmatpush1.bf16.msra.mxu0 0
    %742 = vmatprep.subr.bf16.mxu0 0
    %743 = vmatpush1.bf16.msra.mxu0 0
    %744 = vmatprep.subr.bf16.mxu0 0
    %745 = vmatpush1.bf16.msra.mxu0 0
    %746 = vmatprep.subr.bf16.mxu0 0
    %747 = vmatpush1.bf16.msra.mxu0 0
    %748 = vmatprep.subr.bf16.mxu0 0
    %749 = vmatpush1.bf16.msra.mxu0 0
    %750 = vmatprep.subr.bf16.mxu0 0
    %751 = vmatpush1.bf16.msra.mxu0 %v734
    %752 = vmatprep.subr.bf16.mxu0 0
    %753 = vmatpush2.bf16.msra.mxu0 0
    %754 = vmatprep.subr.bf16.mxu0 0
    %755 = vmatpush2.bf16.msra.mxu0 0
    %756 = vmatprep.subr.bf16.mxu0 0
    %757 = vmatpush2.bf16.msra.mxu0 0
    %758 = vmatprep.subr.bf16.mxu0 0
    %759 = vmatpush2.bf16.msra.mxu0 0
    %760 = vmatprep.subr.bf16.mxu0 0
    %761 = vmatpush2.bf16.msra.mxu0 0
    %762 = vmatprep.subr.bf16.mxu0 0
    %763 = vmatpush2.bf16.msra.mxu0 0
    %764 = vmatprep.subr.bf16.mxu0 0
    %765 = vmatpush2.bf16.msra.mxu0 0
    %766 = vmatprep.subr.bf16.mxu0 0
    %767 = vmatpush2.bf16.msra.mxu0 0
    %768 = vmatprep.mubr.bf16.mxu0 0
    %769 = vmatmul.mubr.bf16.gmra.mxu0 %v731
    %v770 = vpop.f32.mrf.mxu0
    %v771 = vadd.f32 0.0, %v770
    %v772 = vpop.f32.mrf.mxu0
    %v773 = vpop.f32.mrf.mxu0
    %v774 = vpop.f32.mrf.mxu0
    %775 = vdwg.mxu0
    %776 = vrot.lane.b32.xlu0 %v184, 64
    %v777 = vpop.permute.xlu0 %776
    %v779 = vsel %vm193, %v673, 0
    %v782 = vsel %vm684, %v777, 0
    %784 = vmatprep.subr.bf16.mxu0 0
    %785 = vmatpush1.bf16.msra.mxu0 0
    %786 = vmatprep.subr.bf16.mxu0 0
    %787 = vmatpush1.bf16.msra.mxu0 0
    %788 = vmatprep.subr.bf16.mxu0 0
    %789 = vmatpush1.bf16.msra.mxu0 0
    %790 = vmatprep.subr.bf16.mxu0 0
    %791 = vmatpush1.bf16.msra.mxu0 0
    %792 = vmatprep.subr.bf16.mxu0 0
    %793 = vmatpush1.bf16.msra.mxu0 0
    %794 = vmatprep.subr.bf16.mxu0 0
    %795 = vmatpush1.bf16.msra.mxu0 0
    %796 = vmatprep.subr.bf16.mxu0 0
    %797 = vmatpush1.bf16.msra.mxu0 0
    %798 = vmatprep.subr.bf16.mxu0 0
    %799 = vmatpush1.bf16.msra.mxu0 %v782
    %800 = vmatprep.subr.bf16.mxu0 0
    %801 = vmatpush2.bf16.msra.mxu0 0
    %802 = vmatprep.subr.bf16.mxu0 0
    %803 = vmatpush2.bf16.msra.mxu0 0
    %804 = vmatprep.subr.bf16.mxu0 0
    %805 = vmatpush2.bf16.msra.mxu0 0
    %806 = vmatprep.subr.bf16.mxu0 0
    %807 = vmatpush2.bf16.msra.mxu0 0
    %808 = vmatprep.subr.bf16.mxu0 0
    %809 = vmatpush2.bf16.msra.mxu0 0
    %810 = vmatprep.subr.bf16.mxu0 0
    %811 = vmatpush2.bf16.msra.mxu0 0
    %812 = vmatprep.subr.bf16.mxu0 0
    %813 = vmatpush2.bf16.msra.mxu0 0
    %814 = vmatprep.subr.bf16.mxu0 0
    %815 = vmatpush2.bf16.msra.mxu0 0
    %816 = vmatprep.mubr.bf16.mxu0 0
    %817 = vmatmul.mubr.bf16.gmra.mxu0 %v779
    %v818 = vpop.f32.mrf.mxu0
    %v819 = vadd.f32 0.0, %v818
    %v820 = vpop.f32.mrf.mxu0
    %v821 = vpop.f32.mrf.mxu0
    %v822 = vpop.f32.mrf.mxu0
    %823 = vdwg.mxu0
    %824 = vrot.lane.b32.xlu0 %v185, 64
    %v825 = vpop.permute.xlu0 %824
    %v827 = vsel %vm193, %v674, 0
    %v830 = vsel %vm684, %v825, 0
    %832 = vmatprep.subr.bf16.mxu0 0
    %833 = vmatpush1.bf16.msra.mxu0 0
    %834 = vmatprep.subr.bf16.mxu0 0
    %835 = vmatpush1.bf16.msra.mxu0 0
    %836 = vmatprep.subr.bf16.mxu0 0
    %837 = vmatpush1.bf16.msra.mxu0 0
    %838 = vmatprep.subr.bf16.mxu0 0
    %839 = vmatpush1.bf16.msra.mxu0 0
    %840 = vmatprep.subr.bf16.mxu0 0
    %841 = vmatpush1.bf16.msra.mxu0 0
    %842 = vmatprep.subr.bf16.mxu0 0
    %843 = vmatpush1.bf16.msra.mxu0 0
    %844 = vmatprep.subr.bf16.mxu0 0
    %845 = vmatpush1.bf16.msra.mxu0 0
    %846 = vmatprep.subr.bf16.mxu0 0
    %847 = vmatpush1.bf16.msra.mxu0 %v830
    %848 = vmatprep.subr.bf16.mxu0 0
    %849 = vmatpush2.bf16.msra.mxu0 0
    %850 = vmatprep.subr.bf16.mxu0 0
    %851 = vmatpush2.bf16.msra.mxu0 0
    %852 = vmatprep.subr.bf16.mxu0 0
    %853 = vmatpush2.bf16.msra.mxu0 0
    %854 = vmatprep.subr.bf16.mxu0 0
    %855 = vmatpush2.bf16.msra.mxu0 0
    %856 = vmatprep.subr.bf16.mxu0 0
    %857 = vmatpush2.bf16.msra.mxu0 0
    %858 = vmatprep.subr.bf16.mxu0 0
    %859 = vmatpush2.bf16.msra.mxu0 0
    %860 = vmatprep.subr.bf16.mxu0 0
    %861 = vmatpush2.bf16.msra.mxu0 0
    %862 = vmatprep.subr.bf16.mxu0 0
    %863 = vmatpush2.bf16.msra.mxu0 0
    %864 = vmatprep.mubr.bf16.mxu0 0
    %865 = vmatmul.mubr.bf16.gmra.mxu0 %v827
    %v866 = vpop.f32.mrf.mxu0
    %v867 = vadd.f32 0.0, %v866
    %v868 = vpop.f32.mrf.mxu0
    %v869 = vpop.f32.mrf.mxu0
    %v870 = vpop.f32.mrf.mxu0
    %871 = vdwg.mxu0
    %872 = vrot.lane.b32.xlu0 %v186, 64
    %v873 = vpop.permute.xlu0 %872
    %v875 = vsel %vm193, %v675, 0
    %v878 = vsel %vm684, %v873, 0
    %880 = vmatprep.subr.bf16.mxu0 0
    %881 = vmatpush1.bf16.msra.mxu0 0
    %882 = vmatprep.subr.bf16.mxu0 0
    %883 = vmatpush1.bf16.msra.mxu0 0
    %884 = vmatprep.subr.bf16.mxu0 0
    %885 = vmatpush1.bf16.msra.mxu0 0
    %886 = vmatprep.subr.bf16.mxu0 0
    %887 = vmatpush1.bf16.msra.mxu0 0
    %888 = vmatprep.subr.bf16.mxu0 0
    %889 = vmatpush1.bf16.msra.mxu0 0
    %890 = vmatprep.subr.bf16.mxu0 0
    %891 = vmatpush1.bf16.msra.mxu0 0
    %892 = vmatprep.subr.bf16.mxu0 0
    %893 = vmatpush1.bf16.msra.mxu0 0
    %894 = vmatprep.subr.bf16.mxu0 0
    %895 = vmatpush1.bf16.msra.mxu0 %v878
    %896 = vmatprep.subr.bf16.mxu0 0
    %897 = vmatpush2.bf16.msra.mxu0 0
    %898 = vmatprep.subr.bf16.mxu0 0
    %899 = vmatpush2.bf16.msra.mxu0 0
    %900 = vmatprep.subr.bf16.mxu0 0
    %901 = vmatpush2.bf16.msra.mxu0 0
    %902 = vmatprep.subr.bf16.mxu0 0
    %903 = vmatpush2.bf16.msra.mxu0 0
    %904 = vmatprep.subr.bf16.mxu0 0
    %905 = vmatpush2.bf16.msra.mxu0 0
    %906 = vmatprep.subr.bf16.mxu0 0
    %907 = vmatpush2.bf16.msra.mxu0 0
    %908 = vmatprep.subr.bf16.mxu0 0
    %909 = vmatpush2.bf16.msra.mxu0 0
    %910 = vmatprep.subr.bf16.mxu0 0
    %911 = vmatpush2.bf16.msra.mxu0 0
    %912 = vmatprep.mubr.bf16.mxu0 0
    %913 = vmatmul.mubr.bf16.gmra.mxu0 %v875
    %v914 = vpop.f32.mrf.mxu0
    %v915 = vadd.f32 0.0, %v914
    %v916 = vpop.f32.mrf.mxu0
    %v917 = vpop.f32.mrf.mxu0
    %v918 = vpop.f32.mrf.mxu0
    %919 = vdwg.mxu0
    %920 = vrot.lane.b32.xlu0 %v187, 64
    %v921 = vpop.permute.xlu0 %920
    %v923 = vsel %vm193, %v676, 0
    %v926 = vsel %vm684, %v921, 0
    %928 = vmatprep.subr.bf16.mxu0 0
    %929 = vmatpush1.bf16.msra.mxu0 0
    %930 = vmatprep.subr.bf16.mxu0 0
    %931 = vmatpush1.bf16.msra.mxu0 0
    %932 = vmatprep.subr.bf16.mxu0 0
    %933 = vmatpush1.bf16.msra.mxu0 0
    %934 = vmatprep.subr.bf16.mxu0 0
    %935 = vmatpush1.bf16.msra.mxu0 0
    %936 = vmatprep.subr.bf16.mxu0 0
    %937 = vmatpush1.bf16.msra.mxu0 0
    %938 = vmatprep.subr.bf16.mxu0 0
    %939 = vmatpush1.bf16.msra.mxu0 0
    %940 = vmatprep.subr.bf16.mxu0 0
    %941 = vmatpush1.bf16.msra.mxu0 0
    %942 = vmatprep.subr.bf16.mxu0 0
    %943 = vmatpush1.bf16.msra.mxu0 %v926
    %944 = vmatprep.subr.bf16.mxu0 0
    %945 = vmatpush2.bf16.msra.mxu0 0
    %946 = vmatprep.subr.bf16.mxu0 0
    %947 = vmatpush2.bf16.msra.mxu0 0
    %948 = vmatprep.subr.bf16.mxu0 0
    %949 = vmatpush2.bf16.msra.mxu0 0
    %950 = vmatprep.subr.bf16.mxu0 0
    %951 = vmatpush2.bf16.msra.mxu0 0
    %952 = vmatprep.subr.bf16.mxu0 0
    %953 = vmatpush2.bf16.msra.mxu0 0
    %954 = vmatprep.subr.bf16.mxu0 0
    %955 = vmatpush2.bf16.msra.mxu0 0
    %956 = vmatprep.subr.bf16.mxu0 0
    %957 = vmatpush2.bf16.msra.mxu0 0
    %958 = vmatprep.subr.bf16.mxu0 0
    %959 = vmatpush2.bf16.msra.mxu0 0
    %960 = vmatprep.mubr.bf16.mxu0 0
    %961 = vmatmul.mubr.bf16.gmra.mxu0 %v923
    %v962 = vpop.f32.mrf.mxu0
    %v963 = vadd.f32 0.0, %v962
    %v964 = vpop.f32.mrf.mxu0
    %v965 = vpop.f32.mrf.mxu0
    %v966 = vpop.f32.mrf.mxu0
    %967 = vdwg.mxu0
    %968 = vrot.lane.b32.xlu0 %v188, 64
    %v969 = vpop.permute.xlu0 %968
    %v971 = vsel %vm193, %v677, 0
    %v974 = vsel %vm684, %v969, 0
    %976 = vmatprep.subr.bf16.mxu0 0
    %977 = vmatpush1.bf16.msra.mxu0 0
    %978 = vmatprep.subr.bf16.mxu0 0
    %979 = vmatpush1.bf16.msra.mxu0 0
    %980 = vmatprep.subr.bf16.mxu0 0
    %981 = vmatpush1.bf16.msra.mxu0 0
    %982 = vmatprep.subr.bf16.mxu0 0
    %983 = vmatpush1.bf16.msra.mxu0 0
    %984 = vmatprep.subr.bf16.mxu0 0
    %985 = vmatpush1.bf16.msra.mxu0 0
    %986 = vmatprep.subr.bf16.mxu0 0
    %987 = vmatpush1.bf16.msra.mxu0 0
    %988 = vmatprep.subr.bf16.mxu0 0
    %989 = vmatpush1.bf16.msra.mxu0 0
    %990 = vmatprep.subr.bf16.mxu0 0
    %991 = vmatpush1.bf16.msra.mxu0 %v974
    %992 = vmatprep.subr.bf16.mxu0 0
    %993 = vmatpush2.bf16.msra.mxu0 0
    %994 = vmatprep.subr.bf16.mxu0 0
    %995 = vmatpush2.bf16.msra.mxu0 0
    %996 = vmatprep.subr.bf16.mxu0 0
    %997 = vmatpush2.bf16.msra.mxu0 0
    %998 = vmatprep.subr.bf16.mxu0 0
    %999 = vmatpush2.bf16.msra.mxu0 0
    %1000 = vmatprep.subr.bf16.mxu0 0
    %1001 = vmatpush2.bf16.msra.mxu0 0
    %1002 = vmatprep.subr.bf16.mxu0 0
    %1003 = vmatpush2.bf16.msra.mxu0 0
    %1004 = vmatprep.subr.bf16.mxu0 0
    %1005 = vmatpush2.bf16.msra.mxu0 0
    %1006 = vmatprep.subr.bf16.mxu0 0
    %1007 = vmatpush2.bf16.msra.mxu0 0
    %1008 = vmatprep.mubr.bf16.mxu0 0
    %1009 = vmatmul.mubr.bf16.gmra.mxu0 %v971
    %v1010 = vpop.f32.mrf.mxu0
    %v1011 = vadd.f32 0.0, %v1010
    %v1012 = vpop.f32.mrf.mxu0
    %v1013 = vpop.f32.mrf.mxu0
    %v1014 = vpop.f32.mrf.mxu0
    %1015 = vdwg.mxu0
    %1016 = vrot.lane.b32.xlu0 %v189, 64
    %v1017 = vpop.permute.xlu0 %1016
    %v1019 = vsel %vm193, %v678, 0
    %v1022 = vsel %vm684, %v1017, 0
    %1024 = vmatprep.subr.bf16.mxu0 0
    %1025 = vmatpush1.bf16.msra.mxu0 0
    %1026 = vmatprep.subr.bf16.mxu0 0
    %1027 = vmatpush1.bf16.msra.mxu0 0
    %1028 = vmatprep.subr.bf16.mxu0 0
    %1029 = vmatpush1.bf16.msra.mxu0 0
    %1030 = vmatprep.subr.bf16.mxu0 0
    %1031 = vmatpush1.bf16.msra.mxu0 0
    %1032 = vmatprep.subr.bf16.mxu0 0
    %1033 = vmatpush1.bf16.msra.mxu0 0
    %1034 = vmatprep.subr.bf16.mxu0 0
    %1035 = vmatpush1.bf16.msra.mxu0 0
    %1036 = vmatprep.subr.bf16.mxu0 0
    %1037 = vmatpush1.bf16.msra.mxu0 0
    %1038 = vmatprep.subr.bf16.mxu0 0
    %1039 = vmatpush1.bf16.msra.mxu0 %v1022
    %1040 = vmatprep.subr.bf16.mxu0 0
    %1041 = vmatpush2.bf16.msra.mxu0 0
    %1042 = vmatprep.subr.bf16.mxu0 0
    %1043 = vmatpush2.bf16.msra.mxu0 0
    %1044 = vmatprep.subr.bf16.mxu0 0
    %1045 = vmatpush2.bf16.msra.mxu0 0
    %1046 = vmatprep.subr.bf16.mxu0 0
    %1047 = vmatpush2.bf16.msra.mxu0 0
    %1048 = vmatprep.subr.bf16.mxu0 0
    %1049 = vmatpush2.bf16.msra.mxu0 0
    %1050 = vmatprep.subr.bf16.mxu0 0
    %1051 = vmatpush2.bf16.msra.mxu0 0
    %1052 = vmatprep.subr.bf16.mxu0 0
    %1053 = vmatpush2.bf16.msra.mxu0 0
    %1054 = vmatprep.subr.bf16.mxu0 0
    %1055 = vmatpush2.bf16.msra.mxu0 0
    %1056 = vmatprep.mubr.bf16.mxu0 0
    %1057 = vmatmul.mubr.bf16.gmra.mxu0 %v1019
    %v1058 = vpop.f32.mrf.mxu0
    %v1059 = vadd.f32 0.0, %v1058
    %v1060 = vpop.f32.mrf.mxu0
    %v1061 = vpop.f32.mrf.mxu0
    %v1062 = vpop.f32.mrf.mxu0
    %1063 = vdwg.mxu0
    %1065 = vrot.lane.b32.xlu0 %v771, 8
    %v1066 = vpop.permute.xlu0 %1065
    %1069 = vrot.lane.b32.xlu0 %v819, 16
    %v1070 = vpop.permute.xlu0 %1069
    %1073 = vrot.lane.b32.xlu0 %v867, 24
    %v1074 = vpop.permute.xlu0 %1073
    %v1076 = vsel %vm193, %v723, %v1066
    %vm1077 = vcmask 130048
    %v1078 = vsel %vm1077, %v1076, %v1070
    %vm1079 = vcmask 195584
    %v1080 = vsel %vm1079, %v1078, %v1074
    %1082 = vrot.lane.b32.xlu0 %v963, 8
    %v1083 = vpop.permute.xlu0 %1082
    %1086 = vrot.lane.b32.xlu0 %v1011, 16
    %v1087 = vpop.permute.xlu0 %1086
    %1090 = vrot.lane.b32.xlu0 %v1059, 24
    %v1091 = vpop.permute.xlu0 %1090
    %v1093 = vsel %vm193, %v915, %v1083
    %v1094 = vsel %vm1077, %v1093, %v1087
    %v1095 = vsel %vm1079, %v1094, %v1091
    %v1096 = vpack.c.bf16 %v1095, %v1080
    %v1097 = vld [vmem:[%s5] sm:$0xf]
    %v1098 = vld [vmem:[%s5 + $0x4] sm:$0xf]
    %v1099 = vld [vmem:[%s5 + $0x8] sm:$0xf]
    %v1100 = vld [vmem:[%s5 + $0xc] sm:$0xf]
    %v1101 = vld [vmem:[%s6] sm:$0x1]
    %v1103 = vlaneseq
    %v1104 = vshrl.u32 %v1103, 7
    %v1105 = vsub.s32 0, %v1104
    %v1106 = vrot.slane %v1101, %v1105
    %v1112 = vunpack.c.l.b16 %v1097
    %v1113 = vunpack.c.l.b16 %v1098
    %v1114 = vunpack.c.l.b16 %v1099
    %v1115 = vunpack.c.l.b16 %v1100
    %v1116 = vpack.c.b16 %v1113, %v1112
    %v1117 = vpack.c.b16 %v1115, %v1114
    %v1121 = vsel %vm50, %v1096, 0
    %1123 = vmatprep.subr.bf16.mxu0 0
    %1124 = vmatpush1.bf16.msra.mxu0 0
    %1125 = vmatprep.subr.bf16.mxu0 0
    %1126 = vmatpush1.bf16.msra.mxu0 0
    %1127 = vmatprep.subr.bf16.mxu0 0
    %1128 = vmatpush1.bf16.msra.mxu0 0
    %1129 = vmatprep.subr.bf16.mxu0 0
    %1130 = vmatpush1.bf16.msra.mxu0 0
    %1131 = vmatprep.subr.bf16.mxu0 0
    %1132 = vmatpush1.bf16.msra.mxu0 0
    %1133 = vmatprep.subr.bf16.mxu0 0
    %1134 = vmatpush1.bf16.msra.mxu0 0
    %1135 = vmatprep.subr.bf16.mxu0 0
    %1136 = vmatpush1.bf16.msra.mxu0 %v1117
    %1137 = vmatprep.subr.bf16.mxu0 0
    %1138 = vmatpush1.bf16.msra.mxu0 %v1116
    %1139 = vmatprep.subr.bf16.mxu0 0
    %1140 = vmatpush2.bf16.msra.mxu0 0
    %1141 = vmatprep.subr.bf16.mxu0 0
    %1142 = vmatpush2.bf16.msra.mxu0 0
    %1143 = vmatprep.subr.bf16.mxu0 0
    %1144 = vmatpush2.bf16.msra.mxu0 0
    %1145 = vmatprep.subr.bf16.mxu0 0
    %1146 = vmatpush2.bf16.msra.mxu0 0
    %1147 = vmatprep.subr.bf16.mxu0 0
    %1148 = vmatpush2.bf16.msra.mxu0 0
    %1149 = vmatprep.subr.bf16.mxu0 0
    %1150 = vmatpush2.bf16.msra.mxu0 0
    %1151 = vmatprep.subr.bf16.mxu0 0
    %1152 = vmatpush2.bf16.msra.mxu0 0
    %1153 = vmatprep.subr.bf16.mxu0 0
    %1154 = vmatpush2.bf16.msra.mxu0 0
    %1155 = vmatprep.mubr.bf16.mxu0 0
    %1156 = vmatmul.mubr.bf16.gmra.mxu0 %v1121
    %v1157 = vpop.f32.mrf.mxu0
    %v1158 = vadd.f32 %v1106, %v1157
    %v1159 = vpop.f32.mrf.mxu0
    %v1160 = vpop.f32.mrf.mxu0
    %v1161 = vadd.f32 %v1106, %v1160
    %v1162 = vpop.f32.mrf.mxu0
    %1163 = vdwg.mxu0
    %v1164 = vadd.f32 %v46, %v1158
    %v1165 = vadd.f32 %v47, %v1161
    %v1166 = vld [vmem:[%s7] sm:$0x1]
    %v1167 = vld [vmem:[%s8] sm:$0x1]
    %v1168 = vsel %vm50, %v1164, 0.0
    %1169 = vadd.xlane.f32.xlu0 %v1168
    %v1170 = vpop.xlane.xlu0 %1169
    %v1171 = vsel %vm50, %v1165, 0.0
    %1172 = vadd.xlane.f32.xlu0 %v1171
    %v1173 = vpop.xlane.xlu0 %1172
    %v1174 = vmul.f32 %v1170, %v57
    %v1175 = vmul.f32 %v1173, %v57
    %v1176 = vsub.f32 %v1164, %v1174
    %v1177 = vsub.f32 %v1165, %v1175
    %v1178 = vmul.f32 %v1176, %v1176
    %v1179 = vmul.f32 %v1177, %v1177
    %v1180 = vsel %vm50, %v1178, 0.0
    %1181 = vadd.xlane.f32.xlu0 %v1180
    %v1182 = vpop.xlane.xlu0 %1181
    %v1183 = vsel %vm50, %v1179, 0.0
    %1184 = vadd.xlane.f32.xlu0 %v1183
    %v1185 = vpop.xlane.xlu0 %1184
    %v1186 = vmul.f32 %v1182, %v57
    %v1187 = vmul.f32 %v1185, %v57
    %v1188 = vadd.f32 %v1186, 1e-06
    %v1189 = vadd.f32 %v1187, 1e-06
    %v1190 = vrsqrt.pop %v1188
    %v1191 = vrsqrt.pop %v1189
    %v1192 = vmul.f32 %v1176, %v1190
    %v1193 = vmul.f32 %v1177, %v1191
    %v1195 = vlaneseq
    %v1196 = vshrl.u32 %v1195, 7
    %v1197 = vsub.s32 0, %v1196
    %v1198 = vrot.slane %v1166, %v1197
    %v1200 = vmul.f32 %v1192, %v1198
    %v1201 = vmul.f32 %v1193, %v1198
    %v1203 = vlaneseq
    %v1204 = vshrl.u32 %v1203, 7
    %v1205 = vsub.s32 0, %v1204
    %v1206 = vrot.slane %v1167, %v1205
    %v1208 = vadd.f32 %v1200, %v1206
    %v1209 = vadd.f32 %v1201, %v1206
    %v1210 = vpack.c.bf16 %v1209, %v1208
    %v1211 = vld [vmem:[%s9] sm:$0xf]
    %v1212 = vld [vmem:[%s9 + $0x4] sm:$0xf]
    %v1213 = vld [vmem:[%s9 + $0x8] sm:$0xf]
    %v1214 = vld [vmem:[%s9 + $0xc] sm:$0xf]
    %v1215 = vld [vmem:[%s10] sm:$0x1]
    %v1217 = vlaneseq
    %v1218 = vshrl.u32 %v1217, 7
    %v1219 = vsub.s32 0, %v1218
    %v1220 = vrot.slane %v1215, %v1219
    %v1226 = vunpack.c.l.b16 %v1211
    %v1227 = vunpack.c.l.b16 %v1212
    %v1228 = vunpack.c.l.b16 %v1213
    %v1229 = vunpack.c.l.b16 %v1214
    %v1230 = vpack.c.b16 %v1227, %v1226
    %v1231 = vpack.c.b16 %v1229, %v1228
    %v1235 = vsel %vm50, %v1210, 0
    %1237 = vmatprep.subr.bf16.mxu0 0
    %1238 = vmatpush1.bf16.msra.mxu0 0
    %1239 = vmatprep.subr.bf16.mxu0 0
    %1240 = vmatpush1.bf16.msra.mxu0 0
    %1241 = vmatprep.subr.bf16.mxu0 0
    %1242 = vmatpush1.bf16.msra.mxu0 0
    %1243 = vmatprep.subr.bf16.mxu0 0
    %1244 = vmatpush1.bf16.msra.mxu0 0
    %1245 = vmatprep.subr.bf16.mxu0 0
    %1246 = vmatpush1.bf16.msra.mxu0 0
    %1247 = vmatprep.subr.bf16.mxu0 0
    %1248 = vmatpush1.bf16.msra.mxu0 0
    %1249 = vmatprep.subr.bf16.mxu0 0
    %1250 = vmatpush1.bf16.msra.mxu0 %v1231
    %1251 = vmatprep.subr.bf16.mxu0 0
    %1252 = vmatpush1.bf16.msra.mxu0 %v1230
    %1253 = vmatprep.subr.bf16.mxu0 0
    %1254 = vmatpush2.bf16.msra.mxu0 0
    %1255 = vmatprep.subr.bf16.mxu0 0
    %1256 = vmatpush2.bf16.msra.mxu0 0
    %1257 = vmatprep.subr.bf16.mxu0 0
    %1258 = vmatpush2.bf16.msra.mxu0 0
    %1259 = vmatprep.subr.bf16.mxu0 0
    %1260 = vmatpush2.bf16.msra.mxu0 0
    %1261 = vmatprep.subr.bf16.mxu0 0
    %1262 = vmatpush2.bf16.msra.mxu0 0
    %1263 = vmatprep.subr.bf16.mxu0 0
    %1264 = vmatpush2.bf16.msra.mxu0 0
    %1265 = vmatprep.subr.bf16.mxu0 0
    %1266 = vmatpush2.bf16.msra.mxu0 0
    %1267 = vmatprep.subr.bf16.mxu0 0
    %1268 = vmatpush2.bf16.msra.mxu0 0
    %1269 = vmatprep.mubr.bf16.mxu0 0
    %1270 = vmatmul.mubr.bf16.gmra.mxu0 %v1235
    %v1271 = vpop.f32.mrf.mxu0
    %v1272 = vadd.f32 %v1220, %v1271
    %v1273 = vpop.f32.mrf.mxu0
    %v1274 = vpop.f32.mrf.mxu0
    %v1275 = vadd.f32 %v1220, %v1274
    %v1276 = vpop.f32.mrf.mxu0
    %1277 = vdwg.mxu0
    %v1278 = vmul.f32 %v1272, %v1272
    %v1279 = vmul.f32 %v1275, %v1275
    %v1280 = vmul.f32 %v1272, %v1278
    %v1281 = vmul.f32 %v1275, %v1279
    %v1282 = vmul.f32 %v1280, 0.044715
    %v1283 = vmul.f32 %v1281, 0.044715
    %v1284 = vadd.f32 %v1272, %v1282
    %v1285 = vadd.f32 %v1275, %v1283
    %v1286 = vmul.f32 %v1284, 0.7978846
    %v1287 = vmul.f32 %v1285, 0.7978846
    %v1288 = vtanh.pop %v1286
    %v1289 = vtanh.pop %v1287
    %v1290 = vadd.f32 %v1288, 1.0
    %v1291 = vadd.f32 %v1289, 1.0
    %v1292 = vmul.f32 %v1290, 0.5
    %v1293 = vmul.f32 %v1291, 0.5
    %v1294 = vmul.f32 %v1272, %v1292
    %v1295 = vmul.f32 %v1275, %v1293
    %v1296 = vpack.c.bf16 %v1295, %v1294
    %v1297 = vld [vmem:[%s11] sm:$0xf]
    %v1298 = vld [vmem:[%s11 + $0x4] sm:$0xf]
    %v1299 = vld [vmem:[%s11 + $0x8] sm:$0xf]
    %v1300 = vld [vmem:[%s11 + $0xc] sm:$0xf]
    %v1301 = vld [vmem:[%s11 + $0x10] sm:$0xf]
    %v1302 = vld [vmem:[%s11 + $0x14] sm:$0xf]
    %v1303 = vld [vmem:[%s11 + $0x18] sm:$0xf]
    %v1304 = vld [vmem:[%s11 + $0x1c] sm:$0xf]
    %v1305 = vld [vmem:[%s11 + $0x20] sm:$0xf]
    %v1306 = vld [vmem:[%s11 + $0x24] sm:$0xf]
    %v1307 = vld [vmem:[%s11 + $0x28] sm:$0xf]
    %v1308 = vld [vmem:[%s11 + $0x2c] sm:$0xf]
    %v1309 = vld [vmem:[%s11 + $0x30] sm:$0xf]
    %v1310 = vld [vmem:[%s11 + $0x34] sm:$0xf]
    %v1311 = vld [vmem:[%s11 + $0x38] sm:$0xf]
    %v1312 = vld [vmem:[%s11 + $0x3c] sm:$0xf]
    %v1313 = vld [vmem:[%s12] sm:$0x1]
    %v1315 = vlaneseq
    %v1316 = vshrl.u32 %v1315, 7
    %v1317 = vsub.s32 0, %v1316
    %v1318 = vrot.slane %v1313, %v1317
    %v1336 = vunpack.c.l.b16 %v1297
    %v1337 = vunpack.c.l.b16 %v1298
    %v1338 = vunpack.c.l.b16 %v1299
    %v1339 = vunpack.c.l.b16 %v1300
    %v1340 = vunpack.c.l.b16 %v1301
    %v1341 = vunpack.c.l.b16 %v1302
    %v1342 = vunpack.c.l.b16 %v1303
    %v1343 = vunpack.c.l.b16 %v1304
    %v1344 = vunpack.c.l.b16 %v1305
    %v1345 = vunpack.c.l.b16 %v1306
    %v1346 = vunpack.c.l.b16 %v1307
    %v1347 = vunpack.c.l.b16 %v1308
    %v1348 = vunpack.c.l.b16 %v1309
    %v1349 = vunpack.c.l.b16 %v1310
    %v1350 = vunpack.c.l.b16 %v1311
    %v1351 = vunpack.c.l.b16 %v1312
    %v1352 = vpack.c.b16 %v1337, %v1336
    %v1353 = vpack.c.b16 %v1339, %v1338
    %v1354 = vpack.c.b16 %v1341, %v1340
    %v1355 = vpack.c.b16 %v1343, %v1342
    %v1356 = vpack.c.b16 %v1345, %v1344
    %v1357 = vpack.c.b16 %v1347, %v1346
    %v1358 = vpack.c.b16 %v1349, %v1348
    %v1359 = vpack.c.b16 %v1351, %v1350
    %1368 = vmatprep.subr.bf16.mxu0 0
    %1369 = vmatpush1.bf16.msra.mxu0 %v1359
    %1370 = vmatprep.subr.bf16.mxu0 0
    %1371 = vmatpush1.bf16.msra.mxu0 %v1358
    %1372 = vmatprep.subr.bf16.mxu0 0
    %1373 = vmatpush1.bf16.msra.mxu0 %v1357
    %1374 = vmatprep.subr.bf16.mxu0 0
    %1375 = vmatpush1.bf16.msra.mxu0 %v1356
    %1376 = vmatprep.subr.bf16.mxu0 0
    %1377 = vmatpush1.bf16.msra.mxu0 %v1355
    %1378 = vmatprep.subr.bf16.mxu0 0
    %1379 = vmatpush1.bf16.msra.mxu0 %v1354
    %1380 = vmatprep.subr.bf16.mxu0 0
    %1381 = vmatpush1.bf16.msra.mxu0 %v1353
    %1382 = vmatprep.subr.bf16.mxu0 0
    %1383 = vmatpush1.bf16.msra.mxu0 %v1352
    %1384 = vmatprep.subr.bf16.mxu0 0
    %1385 = vmatpush2.bf16.msra.mxu0 0
    %1386 = vmatprep.subr.bf16.mxu0 0
    %1387 = vmatpush2.bf16.msra.mxu0 0
    %1388 = vmatprep.subr.bf16.mxu0 0
    %1389 = vmatpush2.bf16.msra.mxu0 0
    %1390 = vmatprep.subr.bf16.mxu0 0
    %1391 = vmatpush2.bf16.msra.mxu0 0
    %1392 = vmatprep.subr.bf16.mxu0 0
    %1393 = vmatpush2.bf16.msra.mxu0 0
    %1394 = vmatprep.subr.bf16.mxu0 0
    %1395 = vmatpush2.bf16.msra.mxu0 0
    %1396 = vmatprep.subr.bf16.mxu0 0
    %1397 = vmatpush2.bf16.msra.mxu0 0
    %1398 = vmatprep.subr.bf16.mxu0 0
    %1399 = vmatpush2.bf16.msra.mxu0 0
    %1400 = vmatprep.mubr.bf16.mxu0 0
    %1401 = vmatmul.mubr.bf16.gmra.mxu0 %v1296
    %v1402 = vpop.f32.mrf.mxu0
    %v1403 = vadd.f32 %v1318, %v1402
    %v1404 = vpop.f32.mrf.mxu0
    %v1405 = vpop.f32.mrf.mxu0
    %v1406 = vadd.f32 %v1318, %v1405
    %v1407 = vpop.f32.mrf.mxu0
    %1408 = vdwg.mxu0
    %v1409 = vadd.f32 %v1164, %v1403
    %v1410 = vadd.f32 %v1165, %v1406
    %1411 = vst.msk [vmem:[#allocation2] sm:$0xff] %vm50, %v1409
    %1412 = vst.msk [vmem:[#allocation2 + $0x8] sm:$0xff] %vm50, %v1410
    // Predicated region
    $region54: #{tpu_custom_call.1} parent=1 // pred_check
      _
    $region55: #{tpu_custom_call.1} parent=1 // pred_check_branch
      %1414 = sbr.rel (0) target = $region57
    $region56: #{tpu_custom_call.1} parent=1 // pred_region
      %s1416 = ssub.s32 256, 256
      %1417 = vsyncadd [#allocation3], %s1416
      %s1418 = sshll.u32 [#allocation2], 4
      %s1419 = int_to_ptr.vmem [resolvable:$true] %s1418
      %1424 = dma.vmem_to_hbm [thread:$0]  %s1419, 256, %s13, [#allocation3], 128, 128, 8
    $region57: #{tpu_custom_call.1} parent=1 // pred_fallthru
      _
    // Predicated region
    $region58: #{tpu_custom_call.1} parent=1 // pred_check
      _
    $region59: #{tpu_custom_call.1} parent=1 // pred_check_branch
      %1426 = sbr.rel (0) target = $region61
    $region60: #{tpu_custom_call.1} parent=1 // pred_region
      %1427 = dma.done [#allocation3], 256
    $region61: #{tpu_custom_call.1} parent=1 // pred_fallthru
      _
    %1428 = vsyncpa [#allocation3], 1

</llo_original>
